<compile_context>
chip_gen: v5e
topology: v5e:2x2
jax: 0.10.0
libtpu: 0.0.40
codegen_flags: <defaults>
</compile_context>

<pallas_src>
import functools

import jax
import jax.numpy as jnp
from jax.experimental import pallas as pl
from jax.experimental.pallas import tpu as pltpu


HIDDEN = 200       # logical hidden width (matches nn.Linear(latent_dim, 200))
HIDDEN_PAD = 256   # padded to a multiple of 128 lanes for MXU/VPU efficiency


# ----------------------------------------------------------------------------
# Fused decoder kernel
# ----------------------------------------------------------------------------
def _decoder_fused_kernel(
    dt_ref,                      # (max(T-1,1),) f32 in SMEM
    latent_ref,                  # (B, L)      VMEM
    latent_params_ref,           # (B, L)      VMEM
    z0_w1_ref, z0_b1_ref, z0_w2_ref, z0_b2_ref,
    pp_w1_ref, pp_b1_ref, pp_w2_ref, pp_b2_ref,
    gn_w1_ref, gn_b1_ref, gn_w2_ref, gn_b2_ref,
    x_out_ref,                   # (T*B, D)    VMEM   rows ordered t*B + b
    z_out_ref,                   # (T*B, 2)    VMEM   rows ordered t*B + b
    params_out_ref,              # (B, 4)      VMEM
    *, num_t):

    def softplus(y):
        # PyTorch Softplus (beta=1, threshold=20): y for y > 20, else log1p(exp(y))
        return jnp.where(y > 20.0, y, jnp.log1p(jnp.exp(jnp.minimum(y, 20.0))))

    def two_layer(x, w1, b1, w2, b2):
        h = jnp.dot(x, w1, preferred_element_type=jnp.float32) + b1
        h = jnp.maximum(h, 0.0)
        return jnp.dot(h, w2, preferred_element_type=jnp.float32) + b2

    # latent_to_z0_net / latent_to_params_net  (Linear -> ReLU -> Linear -> Softplus)
    z0b = softplus(two_layer(latent_ref[...], z0_w1_ref[...], z0_b1_ref[...],
                             z0_w2_ref[...], z0_b2_ref[...]))          # (B, 2)
    pb = softplus(two_layer(latent_params_ref[...], pp_w1_ref[...], pp_b1_ref[...],
                            pp_w2_ref[...], pp_b2_ref[...]))           # (B, 4)
    params_out_ref[...] = pb

    # Split ODE state into (B, 1) columns once -> RK4 becomes pure VPU work.
    z0 = z0b[:, 0:1]
    z1 = z0b[:, 1:2]
    a = pb[:, 0:1]
    b = pb[:, 1:2]
    c = pb[:, 2:3]
    d = pb[:, 3:4]

    def deriv(u, v):
        prod = u * v
        return a * u - b * prod, d * prod - c * v

    one_third = 1.0 / 3.0
    z0_steps = [z0]
    z1_steps = [z1]
    # Fully unrolled fixed-grid RK4 (torchdiffeq 3/8-rule, rk4_alt_step_func).
    # The ODE is autonomous, so intermediate time arguments are irrelevant.
    for i in range(num_t - 1):
        dt = dt_ref[i]
        k1u, k1v = deriv(z0, z1)
        k2u, k2v = deriv(z0 + dt * one_third * k1u,
                         z1 + dt * one_third * k1v)
        k3u, k3v = deriv(z0 + dt * (k2u - one_third * k1u),
                         z1 + dt * (k2v - one_third * k1v))
        k4u, k4v = deriv(z0 + dt * (k1u - k2u + k3u),
                         z1 + dt * (k1v - k2v + k3v))
        z0 = z0 + dt * 0.125 * (k1u + 3.0 * (k2u + k3u) + k4u)
        z1 = z1 + dt * 0.125 * (k1v + 3.0 * (k2v + k3v) + k4v)
        z0_steps.append(z0)
        z1_steps.append(z1)

    # Flatten trajectory along sublanes (t-major rows: t*B + b).
    z0_col = jnp.concatenate(z0_steps, axis=0)                         # (T*B, 1)
    z1_col = jnp.concatenate(z1_steps, axis=0)                         # (T*B, 1)
    z_out_ref[...] = jnp.concatenate([z0_col, z1_col], axis=1)         # (T*B, 2)

    # generative_net: first layer as VPU broadcast-FMAs (avoids a K=2 MXU op),
    # second layer is one real MXU matmul over the whole trajectory.
    h = (z0_col * gn_w1_ref[0:1, :]
         + z1_col * gn_w1_ref[1:2, :]
         + gn_b1_ref[...])                                             # (T*B, Hp)
    h = jnp.maximum(h, 0.0)
    x = jnp.dot(h, gn_w2_ref[...],
                preferred_element_type=jnp.float32) + gn_b2_ref[...]   # (T*B, D)
    x_out_ref[...] = x


# ----------------------------------------------------------------------------
# Parameter initialization (PyTorch-Linear-style uniform init) + zero padding
# of the hidden dimension 200 -> 256 (exactly semantics-preserving).
# ----------------------------------------------------------------------------
def init_linear(key, fan_in, fan_out):
    kw, kb = jax.random.split(key)
    bound = 1.0 / (fan_in ** 0.5)
    w = jax.random.uniform(kw, (fan_in, fan_out), jnp.float32, -bound, bound)
    b = jax.random.uniform(kb, (1, fan_out), jnp.float32, -bound, bound)
    return w, b


def _pad_hidden(w1, b1, w2, b2, hidden_pad=HIDDEN_PAD):
    pad = hidden_pad - w1.shape[1]
    if pad > 0:
        w1 = jnp.pad(w1, ((0, 0), (0, pad)))
        b1 = jnp.pad(b1, ((0, 0), (0, pad)))
        w2 = jnp.pad(w2, ((0, pad), (0, 0)))
    return w1, b1, w2, b2


def init_decoder_params(key, input_dim, latent_dim, hidden=HIDDEN, ode_dim=2,
                        params_dim=4):
    k = jax.random.split(key, 6)
    z0_w1, z0_b1 = init_linear(k[0], latent_dim, hidden)
    z0_w2, z0_b2 = init_linear(k[1], hidden, ode_dim)
    pp_w1, pp_b1 = init_linear(k[2], latent_dim, hidden)
    pp_w2, pp_b2 = init_linear(k[3], hidden, params_dim)
    gn_w1, gn_b1 = init_linear(k[4], ode_dim, hidden)
    gn_w2, gn_b2 = init_linear(k[5], hidden, input_dim)
    return {
        "z0": _pad_hidden(z0_w1, z0_b1, z0_w2, z0_b2),
        "params": _pad_hidden(pp_w1, pp_b1, pp_w2, pp_b2),
        "gen": _pad_hidden(gn_w1, gn_b1, gn_w2, gn_b2),
    }


# ----------------------------------------------------------------------------
# Decoder forward (matches Decoder.forward in models/GOKU_lv.py, method='rk4')
# ----------------------------------------------------------------------------
def decoder_forward(params, latent_batch, latent_params_batch, t):
    B = latent_batch.shape[0]
    T = t.shape[0]
    D = params["gen"][3].shape[1]          # gn_b2: (1, input_dim)

    if T > 1:
        dt = (t[1:] - t[:-1]).astype(jnp.float32)
    else:
        dt = jnp.zeros((1,), jnp.float32)  # never read (loop is empty)

    kernel = functools.partial(_decoder_fused_kernel, num_t=T)

    vmem = pl.BlockSpec(memory_space=pltpu.MemorySpace.VMEM)
    smem = pl.BlockSpec(memory_space=pltpu.MemorySpace.SMEM)

    x_flat, z_flat, params_out = pl.pallas_call(
        kernel,
        out_shape=(
            jax.ShapeDtypeStruct((T * B, D), jnp.float32),
            jax.ShapeDtypeStruct((T * B, 2), jnp.float32),
            jax.ShapeDtypeStruct((B, 4), jnp.float32),
        ),
        in_specs=[smem] + [vmem] * 14,
        out_specs=(vmem, vmem, vmem),
    )(dt, latent_batch, latent_params_batch,
      *params["z0"], *params["params"], *params["gen"])

    # (T, B, ·) -> (B, T, ·): tiny XLA transpose of the final outputs only.
    predicted_x = jnp.transpose(x_flat.reshape(T, B, D), (1, 0, 2))
    predicted_z = jnp.transpose(z_flat.reshape(T, B, 2), (1, 0, 2))
    params_dict = {
        "a": params_out[:, 0],
        "b": params_out[:, 1],
        "c": params_out[:, 2],
        "d": params_out[:, 3],
    }
    return predicted_x, predicted_z, params_dict


# ----------------------------------------------------------------------------
# Pure-JAX reference (same math) for a correctness spot check.
# ----------------------------------------------------------------------------
def _reference_forward(params, latent, latent_params, t):
    def mlp(x, w1, b1, w2, b2):
        h = jnp.maximum(x @ w1 + b1, 0.0)
        return h @ w2 + b2

    def softplus(y):
        return jnp.where(y > 20.0, y, jnp.log1p(jnp.exp(jnp.minimum(y, 20.0))))

    z0b = softplus(mlp(latent, *params["z0"]))
    pb = softplus(mlp(latent_params, *params["params"]))
    a, b, c, d = pb[:, 0], pb[:, 1], pb[:, 2], pb[:, 3]

    def f(z):
        z0, z1 = z[:, 0], z[:, 1]
        prod = z0 * z1
        return jnp.stack([a * z0 - b * prod, d * prod - c * z1], axis=1)

    zs = [z0b]
    z = z0b
    for i in range(t.shape[0] - 1):
        dt = t[i + 1] - t[i]
        k1 = f(z)
        k2 = f(z + dt * k1 / 3.0)
        k3 = f(z + dt * (k2 - k1 / 3.0))
        k4 = f(z + dt * (k1 - k2 + k3))
        z = z + dt * 0.125 * (k1 + 3.0 * (k2 + k3) + k4)
        zs.append(z)
    predicted_z = jnp.stack(zs, axis=1)                         # (B, T, 2)
    B, T, _ = predicted_z.shape
    x = mlp(predicted_z.reshape(B * T, 2), *params["gen"]).reshape(B, T, -1)
    return x, predicted_z, pb


if __name__ == "__main__":
    batch = 8
    latent_dim = 32
    input_dim = 16
    num_t = 8

    key = jax.random.PRNGKey(0)
    k_params, k_lat, k_latp = jax.random.split(key, 3)

    params = init_decoder_params(k_params, input_dim, latent_dim)
    latent_batch = jax.random.normal(k_lat, (batch, latent_dim), jnp.float32)
    latent_params_batch = jax.random.normal(k_latp, (batch, latent_dim), jnp.float32)
    t = jnp.linspace(0.0, 1.0, num_t, dtype=jnp.float32)

    predicted_x, predicted_z, params_dict = decoder_forward(
        params, latent_batch, latent_params_batch, t)
    jax.block_until_ready((predicted_x, predicted_z, params_dict))

    assert predicted_x.shape == (batch, num_t, input_dim)
    assert predicted_z.shape == (batch, num_t, 2)
    assert params_dict["a"].shape == (batch,)
    assert bool(jnp.all(jnp.isfinite(predicted_x)))
    assert bool(jnp.all(jnp.isfinite(predicted_z)))

    ref_x, ref_z, ref_p = _reference_forward(
        params, latent_batch, latent_params_batch, t)
    assert bool(jnp.allclose(predicted_x, ref_x, rtol=2e-3, atol=2e-3))
    assert bool(jnp.allclose(predicted_z, ref_z, rtol=2e-3, atol=2e-3))
    assert bool(jnp.allclose(params_dict["a"], ref_p[:, 0], rtol=2e-3, atol=2e-3))

    print("KERNEL_OK")
</pallas_src>

<mosaic_0001>
module attributes {stable_mosaic.version = 11 : i64} {
  func.func @_decoder_fused_kernel(%arg0: memref<7xf32, #tpu.memory_space<smem>>, %arg1: memref<8x32xf32, #tpu.memory_space<vmem>>, %arg2: memref<8x32xf32, #tpu.memory_space<vmem>>, %arg3: memref<32x256xf32, #tpu.memory_space<vmem>>, %arg4: memref<1x256xf32, #tpu.memory_space<vmem>>, %arg5: memref<256x2xf32, #tpu.memory_space<vmem>>, %arg6: memref<1x2xf32, #tpu.memory_space<vmem>>, %arg7: memref<32x256xf32, #tpu.memory_space<vmem>>, %arg8: memref<1x256xf32, #tpu.memory_space<vmem>>, %arg9: memref<256x4xf32, #tpu.memory_space<vmem>>, %arg10: memref<1x4xf32, #tpu.memory_space<vmem>>, %arg11: memref<2x256xf32, #tpu.memory_space<vmem>>, %arg12: memref<1x256xf32, #tpu.memory_space<vmem>>, %arg13: memref<256x16xf32, #tpu.memory_space<vmem>>, %arg14: memref<1x16xf32, #tpu.memory_space<vmem>>, %arg15: memref<64x16xf32, #tpu.memory_space<vmem>>, %arg16: memref<64x2xf32, #tpu.memory_space<vmem>>, %arg17: memref<8x4xf32, #tpu.memory_space<vmem>>) attributes {dimension_semantics = [], scalar_prefetch = 0 : i64, scratch_operands = 0 : i64, tpu.core_type = #tpu.core_type<tc>} {
    %c0 = arith.constant 0 : index
    %c0_0 = arith.constant 0 : index
    %0 = vector.load %arg1[%c0, %c0_0] : memref<8x32xf32, #tpu.memory_space<vmem>>, vector<8x32xf32>
    %c0_1 = arith.constant 0 : index
    %c0_2 = arith.constant 0 : index
    %1 = vector.load %arg3[%c0_1, %c0_2] : memref<32x256xf32, #tpu.memory_space<vmem>>, vector<32x256xf32>
    %c0_3 = arith.constant 0 : index
    %c0_4 = arith.constant 0 : index
    %2 = vector.load %arg4[%c0_3, %c0_4] : memref<1x256xf32, #tpu.memory_space<vmem>>, vector<1x256xf32>
    %c0_5 = arith.constant 0 : index
    %c0_6 = arith.constant 0 : index
    %3 = vector.load %arg5[%c0_5, %c0_6] : memref<256x2xf32, #tpu.memory_space<vmem>>, vector<256x2xf32>
    %c0_7 = arith.constant 0 : index
    %c0_8 = arith.constant 0 : index
    %4 = vector.load %arg6[%c0_7, %c0_8] : memref<1x2xf32, #tpu.memory_space<vmem>>, vector<1x2xf32>
    %cst = arith.constant dense<0.000000e+00> : vector<8x256xf32>
    %5 = tpu.matmul %0, %1, %cst {dimension_numbers = #tpu.dot_dimension_numbers<[1], [0], [0], [1], [0, 0, 1, 1], [], []>} : vector<8x32xf32>, vector<32x256xf32>, vector<8x256xf32> -> vector<8x256xf32>
    %6 = vector.broadcast %2 : vector<1x256xf32> to vector<8x256xf32>
    %7 = arith.addf %5, %6 : vector<8x256xf32>
    %cst_9 = arith.constant 0.000000e+00 : f32
    %8 = vector.broadcast %cst_9 : f32 to vector<8x256xf32>
    %9 = arith.maximumf %7, %8 : vector<8x256xf32>
    %cst_10 = arith.constant dense<0.000000e+00> : vector<8x2xf32>
    %10 = tpu.matmul %9, %3, %cst_10 {dimension_numbers = #tpu.dot_dimension_numbers<[1], [0], [0], [1], [0, 0, 1, 1], [], []>} : vector<8x256xf32>, vector<256x2xf32>, vector<8x2xf32> -> vector<8x2xf32>
    %11 = vector.broadcast %4 : vector<1x2xf32> to vector<8x2xf32>
    %12 = arith.addf %10, %11 : vector<8x2xf32>
    %cst_11 = arith.constant 2.000000e+01 : f32
    %13 = vector.broadcast %cst_11 : f32 to vector<8x2xf32>
    %14 = arith.cmpf ogt, %12, %13 : vector<8x2xf32>
    %cst_12 = arith.constant 2.000000e+01 : f32
    %15 = vector.broadcast %cst_12 : f32 to vector<8x2xf32>
    %16 = arith.minimumf %12, %15 : vector<8x2xf32>
    %17 = math.exp %16 : vector<8x2xf32>
    %18 = math.log1p %17 : vector<8x2xf32>
    %19 = arith.select %14, %12, %18 : vector<8x2xi1>, vector<8x2xf32>
    %c0_13 = arith.constant 0 : index
    %c0_14 = arith.constant 0 : index
    %20 = vector.load %arg2[%c0_13, %c0_14] : memref<8x32xf32, #tpu.memory_space<vmem>>, vector<8x32xf32>
    %c0_15 = arith.constant 0 : index
    %c0_16 = arith.constant 0 : index
    %21 = vector.load %arg7[%c0_15, %c0_16] : memref<32x256xf32, #tpu.memory_space<vmem>>, vector<32x256xf32>
    %c0_17 = arith.constant 0 : index
    %c0_18 = arith.constant 0 : index
    %22 = vector.load %arg8[%c0_17, %c0_18] : memref<1x256xf32, #tpu.memory_space<vmem>>, vector<1x256xf32>
    %c0_19 = arith.constant 0 : index
    %c0_20 = arith.constant 0 : index
    %23 = vector.load %arg9[%c0_19, %c0_20] : memref<256x4xf32, #tpu.memory_space<vmem>>, vector<256x4xf32>
    %c0_21 = arith.constant 0 : index
    %c0_22 = arith.constant 0 : index
    %24 = vector.load %arg10[%c0_21, %c0_22] : memref<1x4xf32, #tpu.memory_space<vmem>>, vector<1x4xf32>
    %cst_23 = arith.constant dense<0.000000e+00> : vector<8x256xf32>
    %25 = tpu.matmul %20, %21, %cst_23 {dimension_numbers = #tpu.dot_dimension_numbers<[1], [0], [0], [1], [0, 0, 1, 1], [], []>} : vector<8x32xf32>, vector<32x256xf32>, vector<8x256xf32> -> vector<8x256xf32>
    %26 = vector.broadcast %22 : vector<1x256xf32> to vector<8x256xf32>
    %27 = arith.addf %25, %26 : vector<8x256xf32>
    %cst_24 = arith.constant 0.000000e+00 : f32
    %28 = vector.broadcast %cst_24 : f32 to vector<8x256xf32>
    %29 = arith.maximumf %27, %28 : vector<8x256xf32>
    %cst_25 = arith.constant dense<0.000000e+00> : vector<8x4xf32>
    %30 = tpu.matmul %29, %23, %cst_25 {dimension_numbers = #tpu.dot_dimension_numbers<[1], [0], [0], [1], [0, 0, 1, 1], [], []>} : vector<8x256xf32>, vector<256x4xf32>, vector<8x4xf32> -> vector<8x4xf32>
    %31 = vector.broadcast %24 : vector<1x4xf32> to vector<8x4xf32>
    %32 = arith.addf %30, %31 : vector<8x4xf32>
    %cst_26 = arith.constant 2.000000e+01 : f32
    %33 = vector.broadcast %cst_26 : f32 to vector<8x4xf32>
    %34 = arith.cmpf ogt, %32, %33 : vector<8x4xf32>
    %cst_27 = arith.constant 2.000000e+01 : f32
    %35 = vector.broadcast %cst_27 : f32 to vector<8x4xf32>
    %36 = arith.minimumf %32, %35 : vector<8x4xf32>
    %37 = math.exp %36 : vector<8x4xf32>
    %38 = math.log1p %37 : vector<8x4xf32>
    %39 = arith.select %34, %32, %38 : vector<8x4xi1>, vector<8x4xf32>
    %c0_28 = arith.constant 0 : index
    %c0_29 = arith.constant 0 : index
    %40 = vector.load %arg17[%c0_28, %c0_29] : memref<8x4xf32, #tpu.memory_space<vmem>>, vector<8x4xf32>
    tpu.vector_store %arg17[%c0_28, %c0_29], %39 {strides = array<i32>} : memref<8x4xf32, #tpu.memory_space<vmem>>, vector<8x4xf32>,
    %41 = vector.extract_strided_slice %19 {offsets = [0, 0], sizes = [8, 1], strides = [1, 1]} : vector<8x2xf32> to vector<8x1xf32>
    %42 = vector.extract_strided_slice %19 {offsets = [0, 1], sizes = [8, 1], strides = [1, 1]} : vector<8x2xf32> to vector<8x1xf32>
    %43 = vector.extract_strided_slice %39 {offsets = [0, 0], sizes = [8, 1], strides = [1, 1]} : vector<8x4xf32> to vector<8x1xf32>
    %44 = vector.extract_strided_slice %39 {offsets = [0, 1], sizes = [8, 1], strides = [1, 1]} : vector<8x4xf32> to vector<8x1xf32>
    %45 = vector.extract_strided_slice %39 {offsets = [0, 2], sizes = [8, 1], strides = [1, 1]} : vector<8x4xf32> to vector<8x1xf32>
    %46 = vector.extract_strided_slice %39 {offsets = [0, 3], sizes = [8, 1], strides = [1, 1]} : vector<8x4xf32> to vector<8x1xf32>
    %c0_30 = arith.constant 0 : index
    %47 = memref.load %arg0[%c0_30] : memref<7xf32, #tpu.memory_space<smem>>
    %48 = arith.mulf %41, %42 : vector<8x1xf32>
    %49 = arith.mulf %43, %41 : vector<8x1xf32>
    %50 = arith.mulf %44, %48 : vector<8x1xf32>
    %51 = arith.subf %49, %50 : vector<8x1xf32>
    %52 = arith.mulf %46, %48 : vector<8x1xf32>
    %53 = arith.mulf %45, %42 : vector<8x1xf32>
    %54 = arith.subf %52, %53 : vector<8x1xf32>
    %cst_31 = arith.constant 0.333333343 : f32
    %55 = arith.mulf %47, %cst_31 : f32
    %56 = vector.broadcast %55 : f32 to vector<8x1xf32>
    %57 = arith.mulf %56, %51 : vector<8x1xf32>
    %58 = arith.addf %41, %57 : vector<8x1xf32>
    %cst_32 = arith.constant 0.333333343 : f32
    %59 = arith.mulf %47, %cst_32 : f32
    %60 = vector.broadcast %59 : f32 to vector<8x1xf32>
    %61 = arith.mulf %60, %54 : vector<8x1xf32>
    %62 = arith.addf %42, %61 : vector<8x1xf32>
    %63 = arith.mulf %58, %62 : vector<8x1xf32>
    %64 = arith.mulf %43, %58 : vector<8x1xf32>
    %65 = arith.mulf %44, %63 : vector<8x1xf32>
    %66 = arith.subf %64, %65 : vector<8x1xf32>
    %67 = arith.mulf %46, %63 : vector<8x1xf32>
    %68 = arith.mulf %45, %62 : vector<8x1xf32>
    %69 = arith.subf %67, %68 : vector<8x1xf32>
    %cst_33 = arith.constant 0.333333343 : f32
    %70 = vector.broadcast %cst_33 : f32 to vector<8x1xf32>
    %71 = arith.mulf %70, %51 : vector<8x1xf32>
    %72 = arith.subf %66, %71 : vector<8x1xf32>
    %73 = vector.broadcast %47 : f32 to vector<8x1xf32>
    %74 = arith.mulf %73, %72 : vector<8x1xf32>
    %75 = arith.addf %41, %74 : vector<8x1xf32>
    %cst_34 = arith.constant 0.333333343 : f32
    %76 = vector.broadcast %cst_34 : f32 to vector<8x1xf32>
    %77 = arith.mulf %76, %54 : vector<8x1xf32>
    %78 = arith.subf %69, %77 : vector<8x1xf32>
    %79 = vector.broadcast %47 : f32 to vector<8x1xf32>
    %80 = arith.mulf %79, %78 : vector<8x1xf32>
    %81 = arith.addf %42, %80 : vector<8x1xf32>
    %82 = arith.mulf %75, %81 : vector<8x1xf32>
    %83 = arith.mulf %43, %75 : vector<8x1xf32>
    %84 = arith.mulf %44, %82 : vector<8x1xf32>
    %85 = arith.subf %83, %84 : vector<8x1xf32>
    %86 = arith.mulf %46, %82 : vector<8x1xf32>
    %87 = arith.mulf %45, %81 : vector<8x1xf32>
    %88 = arith.subf %86, %87 : vector<8x1xf32>
    %89 = arith.subf %51, %66 : vector<8x1xf32>
    %90 = arith.addf %89, %85 : vector<8x1xf32>
    %91 = vector.broadcast %47 : f32 to vector<8x1xf32>
    %92 = arith.mulf %91, %90 : vector<8x1xf32>
    %93 = arith.addf %41, %92 : vector<8x1xf32>
    %94 = arith.subf %54, %69 : vector<8x1xf32>
    %95 = arith.addf %94, %88 : vector<8x1xf32>
    %96 = vector.broadcast %47 : f32 to vector<8x1xf32>
    %97 = arith.mulf %96, %95 : vector<8x1xf32>
    %98 = arith.addf %42, %97 : vector<8x1xf32>
    %99 = arith.mulf %93, %98 : vector<8x1xf32>
    %100 = arith.mulf %43, %93 : vector<8x1xf32>
    %101 = arith.mulf %44, %99 : vector<8x1xf32>
    %102 = arith.subf %100, %101 : vector<8x1xf32>
    %103 = arith.mulf %46, %99 : vector<8x1xf32>
    %104 = arith.mulf %45, %98 : vector<8x1xf32>
    %105 = arith.subf %103, %104 : vector<8x1xf32>
    %cst_35 = arith.constant 1.250000e-01 : f32
    %106 = arith.mulf %47, %cst_35 : f32
    %107 = arith.addf %66, %85 : vector<8x1xf32>
    %cst_36 = arith.constant 3.000000e+00 : f32
    %108 = vector.broadcast %cst_36 : f32 to vector<8x1xf32>
    %109 = arith.mulf %108, %107 : vector<8x1xf32>
    %110 = arith.addf %51, %109 : vector<8x1xf32>
    %111 = arith.addf %110, %102 : vector<8x1xf32>
    %112 = vector.broadcast %106 : f32 to vector<8x1xf32>
    %113 = arith.mulf %112, %111 : vector<8x1xf32>
    %114 = arith.addf %41, %113 : vector<8x1xf32>
    %cst_37 = arith.constant 1.250000e-01 : f32
    %115 = arith.mulf %47, %cst_37 : f32
    %116 = arith.addf %69, %88 : vector<8x1xf32>
    %cst_38 = arith.constant 3.000000e+00 : f32
    %117 = vector.broadcast %cst_38 : f32 to vector<8x1xf32>
    %118 = arith.mulf %117, %116 : vector<8x1xf32>
    %119 = arith.addf %54, %118 : vector<8x1xf32>
    %120 = arith.addf %119, %105 : vector<8x1xf32>
    %121 = vector.broadcast %115 : f32 to vector<8x1xf32>
    %122 = arith.mulf %121, %120 : vector<8x1xf32>
    %123 = arith.addf %42, %122 : vector<8x1xf32>
    %c1 = arith.constant 1 : index
    %124 = memref.load %arg0[%c1] : memref<7xf32, #tpu.memory_space<smem>>
    %125 = arith.mulf %114, %123 : vector<8x1xf32>
    %126 = arith.mulf %43, %114 : vector<8x1xf32>
    %127 = arith.mulf %44, %125 : vector<8x1xf32>
    %128 = arith.subf %126, %127 : vector<8x1xf32>
    %129 = arith.mulf %46, %125 : vector<8x1xf32>
    %130 = arith.mulf %45, %123 : vector<8x1xf32>
    %131 = arith.subf %129, %130 : vector<8x1xf32>
    %cst_39 = arith.constant 0.333333343 : f32
    %132 = arith.mulf %124, %cst_39 : f32
    %133 = vector.broadcast %132 : f32 to vector<8x1xf32>
    %134 = arith.mulf %133, %128 : vector<8x1xf32>
    %135 = arith.addf %114, %134 : vector<8x1xf32>
    %cst_40 = arith.constant 0.333333343 : f32
    %136 = arith.mulf %124, %cst_40 : f32
    %137 = vector.broadcast %136 : f32 to vector<8x1xf32>
    %138 = arith.mulf %137, %131 : vector<8x1xf32>
    %139 = arith.addf %123, %138 : vector<8x1xf32>
    %140 = arith.mulf %135, %139 : vector<8x1xf32>
    %141 = arith.mulf %43, %135 : vector<8x1xf32>
    %142 = arith.mulf %44, %140 : vector<8x1xf32>
    %143 = arith.subf %141, %142 : vector<8x1xf32>
    %144 = arith.mulf %46, %140 : vector<8x1xf32>
    %145 = arith.mulf %45, %139 : vector<8x1xf32>
    %146 = arith.subf %144, %145 : vector<8x1xf32>
    %cst_41 = arith.constant 0.333333343 : f32
    %147 = vector.broadcast %cst_41 : f32 to vector<8x1xf32>
    %148 = arith.mulf %147, %128 : vector<8x1xf32>
    %149 = arith.subf %143, %148 : vector<8x1xf32>
    %150 = vector.broadcast %124 : f32 to vector<8x1xf32>
    %151 = arith.mulf %150, %149 : vector<8x1xf32>
    %152 = arith.addf %114, %151 : vector<8x1xf32>
    %cst_42 = arith.constant 0.333333343 : f32
    %153 = vector.broadcast %cst_42 : f32 to vector<8x1xf32>
    %154 = arith.mulf %153, %131 : vector<8x1xf32>
    %155 = arith.subf %146, %154 : vector<8x1xf32>
    %156 = vector.broadcast %124 : f32 to vector<8x1xf32>
    %157 = arith.mulf %156, %155 : vector<8x1xf32>
    %158 = arith.addf %123, %157 : vector<8x1xf32>
    %159 = arith.mulf %152, %158 : vector<8x1xf32>
    %160 = arith.mulf %43, %152 : vector<8x1xf32>
    %161 = arith.mulf %44, %159 : vector<8x1xf32>
    %162 = arith.subf %160, %161 : vector<8x1xf32>
    %163 = arith.mulf %46, %159 : vector<8x1xf32>
    %164 = arith.mulf %45, %158 : vector<8x1xf32>
    %165 = arith.subf %163, %164 : vector<8x1xf32>
    %166 = arith.subf %128, %143 : vector<8x1xf32>
    %167 = arith.addf %166, %162 : vector<8x1xf32>
    %168 = vector.broadcast %124 : f32 to vector<8x1xf32>
    %169 = arith.mulf %168, %167 : vector<8x1xf32>
    %170 = arith.addf %114, %169 : vector<8x1xf32>
    %171 = arith.subf %131, %146 : vector<8x1xf32>
    %172 = arith.addf %171, %165 : vector<8x1xf32>
    %173 = vector.broadcast %124 : f32 to vector<8x1xf32>
    %174 = arith.mulf %173, %172 : vector<8x1xf32>
    %175 = arith.addf %123, %174 : vector<8x1xf32>
    %176 = arith.mulf %170, %175 : vector<8x1xf32>
    %177 = arith.mulf %43, %170 : vector<8x1xf32>
    %178 = arith.mulf %44, %176 : vector<8x1xf32>
    %179 = arith.subf %177, %178 : vector<8x1xf32>
    %180 = arith.mulf %46, %176 : vector<8x1xf32>
    %181 = arith.mulf %45, %175 : vector<8x1xf32>
    %182 = arith.subf %180, %181 : vector<8x1xf32>
    %cst_43 = arith.constant 1.250000e-01 : f32
    %183 = arith.mulf %124, %cst_43 : f32
    %184 = arith.addf %143, %162 : vector<8x1xf32>
    %cst_44 = arith.constant 3.000000e+00 : f32
    %185 = vector.broadcast %cst_44 : f32 to vector<8x1xf32>
    %186 = arith.mulf %185, %184 : vector<8x1xf32>
    %187 = arith.addf %128, %186 : vector<8x1xf32>
    %188 = arith.addf %187, %179 : vector<8x1xf32>
    %189 = vector.broadcast %183 : f32 to vector<8x1xf32>
    %190 = arith.mulf %189, %188 : vector<8x1xf32>
    %191 = arith.addf %114, %190 : vector<8x1xf32>
    %cst_45 = arith.constant 1.250000e-01 : f32
    %192 = arith.mulf %124, %cst_45 : f32
    %193 = arith.addf %146, %165 : vector<8x1xf32>
    %cst_46 = arith.constant 3.000000e+00 : f32
    %194 = vector.broadcast %cst_46 : f32 to vector<8x1xf32>
    %195 = arith.mulf %194, %193 : vector<8x1xf32>
    %196 = arith.addf %131, %195 : vector<8x1xf32>
    %197 = arith.addf %196, %182 : vector<8x1xf32>
    %198 = vector.broadcast %192 : f32 to vector<8x1xf32>
    %199 = arith.mulf %198, %197 : vector<8x1xf32>
    %200 = arith.addf %123, %199 : vector<8x1xf32>
    %c2 = arith.constant 2 : index
    %201 = memref.load %arg0[%c2] : memref<7xf32, #tpu.memory_space<smem>>
    %202 = arith.mulf %191, %200 : vector<8x1xf32>
    %203 = arith.mulf %43, %191 : vector<8x1xf32>
    %204 = arith.mulf %44, %202 : vector<8x1xf32>
    %205 = arith.subf %203, %204 : vector<8x1xf32>
    %206 = arith.mulf %46, %202 : vector<8x1xf32>
    %207 = arith.mulf %45, %200 : vector<8x1xf32>
    %208 = arith.subf %206, %207 : vector<8x1xf32>
    %cst_47 = arith.constant 0.333333343 : f32
    %209 = arith.mulf %201, %cst_47 : f32
    %210 = vector.broadcast %209 : f32 to vector<8x1xf32>
    %211 = arith.mulf %210, %205 : vector<8x1xf32>
    %212 = arith.addf %191, %211 : vector<8x1xf32>
    %cst_48 = arith.constant 0.333333343 : f32
    %213 = arith.mulf %201, %cst_48 : f32
    %214 = vector.broadcast %213 : f32 to vector<8x1xf32>
    %215 = arith.mulf %214, %208 : vector<8x1xf32>
    %216 = arith.addf %200, %215 : vector<8x1xf32>
    %217 = arith.mulf %212, %216 : vector<8x1xf32>
    %218 = arith.mulf %43, %212 : vector<8x1xf32>
    %219 = arith.mulf %44, %217 : vector<8x1xf32>
    %220 = arith.subf %218, %219 : vector<8x1xf32>
    %221 = arith.mulf %46, %217 : vector<8x1xf32>
    %222 = arith.mulf %45, %216 : vector<8x1xf32>
    %223 = arith.subf %221, %222 : vector<8x1xf32>
    %cst_49 = arith.constant 0.333333343 : f32
    %224 = vector.broadcast %cst_49 : f32 to vector<8x1xf32>
    %225 = arith.mulf %224, %205 : vector<8x1xf32>
    %226 = arith.subf %220, %225 : vector<8x1xf32>
    %227 = vector.broadcast %201 : f32 to vector<8x1xf32>
    %228 = arith.mulf %227, %226 : vector<8x1xf32>
    %229 = arith.addf %191, %228 : vector<8x1xf32>
    %cst_50 = arith.constant 0.333333343 : f32
    %230 = vector.broadcast %cst_50 : f32 to vector<8x1xf32>
    %231 = arith.mulf %230, %208 : vector<8x1xf32>
    %232 = arith.subf %223, %231 : vector<8x1xf32>
    %233 = vector.broadcast %201 : f32 to vector<8x1xf32>
    %234 = arith.mulf %233, %232 : vector<8x1xf32>
    %235 = arith.addf %200, %234 : vector<8x1xf32>
    %236 = arith.mulf %229, %235 : vector<8x1xf32>
    %237 = arith.mulf %43, %229 : vector<8x1xf32>
    %238 = arith.mulf %44, %236 : vector<8x1xf32>
    %239 = arith.subf %237, %238 : vector<8x1xf32>
    %240 = arith.mulf %46, %236 : vector<8x1xf32>
    %241 = arith.mulf %45, %235 : vector<8x1xf32>
    %242 = arith.subf %240, %241 : vector<8x1xf32>
    %243 = arith.subf %205, %220 : vector<8x1xf32>
    %244 = arith.addf %243, %239 : vector<8x1xf32>
    %245 = vector.broadcast %201 : f32 to vector<8x1xf32>
    %246 = arith.mulf %245, %244 : vector<8x1xf32>
    %247 = arith.addf %191, %246 : vector<8x1xf32>
    %248 = arith.subf %208, %223 : vector<8x1xf32>
    %249 = arith.addf %248, %242 : vector<8x1xf32>
    %250 = vector.broadcast %201 : f32 to vector<8x1xf32>
    %251 = arith.mulf %250, %249 : vector<8x1xf32>
    %252 = arith.addf %200, %251 : vector<8x1xf32>
    %253 = arith.mulf %247, %252 : vector<8x1xf32>
    %254 = arith.mulf %43, %247 : vector<8x1xf32>
    %255 = arith.mulf %44, %253 : vector<8x1xf32>
    %256 = arith.subf %254, %255 : vector<8x1xf32>
    %257 = arith.mulf %46, %253 : vector<8x1xf32>
    %258 = arith.mulf %45, %252 : vector<8x1xf32>
    %259 = arith.subf %257, %258 : vector<8x1xf32>
    %cst_51 = arith.constant 1.250000e-01 : f32
    %260 = arith.mulf %201, %cst_51 : f32
    %261 = arith.addf %220, %239 : vector<8x1xf32>
    %cst_52 = arith.constant 3.000000e+00 : f32
    %262 = vector.broadcast %cst_52 : f32 to vector<8x1xf32>
    %263 = arith.mulf %262, %261 : vector<8x1xf32>
    %264 = arith.addf %205, %263 : vector<8x1xf32>
    %265 = arith.addf %264, %256 : vector<8x1xf32>
    %266 = vector.broadcast %260 : f32 to vector<8x1xf32>
    %267 = arith.mulf %266, %265 : vector<8x1xf32>
    %268 = arith.addf %191, %267 : vector<8x1xf32>
    %cst_53 = arith.constant 1.250000e-01 : f32
    %269 = arith.mulf %201, %cst_53 : f32
    %270 = arith.addf %223, %242 : vector<8x1xf32>
    %cst_54 = arith.constant 3.000000e+00 : f32
    %271 = vector.broadcast %cst_54 : f32 to vector<8x1xf32>
    %272 = arith.mulf %271, %270 : vector<8x1xf32>
    %273 = arith.addf %208, %272 : vector<8x1xf32>
    %274 = arith.addf %273, %259 : vector<8x1xf32>
    %275 = vector.broadcast %269 : f32 to vector<8x1xf32>
    %276 = arith.mulf %275, %274 : vector<8x1xf32>
    %277 = arith.addf %200, %276 : vector<8x1xf32>
    %c3 = arith.constant 3 : index
    %278 = memref.load %arg0[%c3] : memref<7xf32, #tpu.memory_space<smem>>
    %279 = arith.mulf %268, %277 : vector<8x1xf32>
    %280 = arith.mulf %43, %268 : vector<8x1xf32>
    %281 = arith.mulf %44, %279 : vector<8x1xf32>
    %282 = arith.subf %280, %281 : vector<8x1xf32>
    %283 = arith.mulf %46, %279 : vector<8x1xf32>
    %284 = arith.mulf %45, %277 : vector<8x1xf32>
    %285 = arith.subf %283, %284 : vector<8x1xf32>
    %cst_55 = arith.constant 0.333333343 : f32
    %286 = arith.mulf %278, %cst_55 : f32
    %287 = vector.broadcast %286 : f32 to vector<8x1xf32>
    %288 = arith.mulf %287, %282 : vector<8x1xf32>
    %289 = arith.addf %268, %288 : vector<8x1xf32>
    %cst_56 = arith.constant 0.333333343 : f32
    %290 = arith.mulf %278, %cst_56 : f32
    %291 = vector.broadcast %290 : f32 to vector<8x1xf32>
    %292 = arith.mulf %291, %285 : vector<8x1xf32>
    %293 = arith.addf %277, %292 : vector<8x1xf32>
    %294 = arith.mulf %289, %293 : vector<8x1xf32>
    %295 = arith.mulf %43, %289 : vector<8x1xf32>
    %296 = arith.mulf %44, %294 : vector<8x1xf32>
    %297 = arith.subf %295, %296 : vector<8x1xf32>
    %298 = arith.mulf %46, %294 : vector<8x1xf32>
    %299 = arith.mulf %45, %293 : vector<8x1xf32>
    %300 = arith.subf %298, %299 : vector<8x1xf32>
    %cst_57 = arith.constant 0.333333343 : f32
    %301 = vector.broadcast %cst_57 : f32 to vector<8x1xf32>
    %302 = arith.mulf %301, %282 : vector<8x1xf32>
    %303 = arith.subf %297, %302 : vector<8x1xf32>
    %304 = vector.broadcast %278 : f32 to vector<8x1xf32>
    %305 = arith.mulf %304, %303 : vector<8x1xf32>
    %306 = arith.addf %268, %305 : vector<8x1xf32>
    %cst_58 = arith.constant 0.333333343 : f32
    %307 = vector.broadcast %cst_58 : f32 to vector<8x1xf32>
    %308 = arith.mulf %307, %285 : vector<8x1xf32>
    %309 = arith.subf %300, %308 : vector<8x1xf32>
    %310 = vector.broadcast %278 : f32 to vector<8x1xf32>
    %311 = arith.mulf %310, %309 : vector<8x1xf32>
    %312 = arith.addf %277, %311 : vector<8x1xf32>
    %313 = arith.mulf %306, %312 : vector<8x1xf32>
    %314 = arith.mulf %43, %306 : vector<8x1xf32>
    %315 = arith.mulf %44, %313 : vector<8x1xf32>
    %316 = arith.subf %314, %315 : vector<8x1xf32>
    %317 = arith.mulf %46, %313 : vector<8x1xf32>
    %318 = arith.mulf %45, %312 : vector<8x1xf32>
    %319 = arith.subf %317, %318 : vector<8x1xf32>
    %320 = arith.subf %282, %297 : vector<8x1xf32>
    %321 = arith.addf %320, %316 : vector<8x1xf32>
    %322 = vector.broadcast %278 : f32 to vector<8x1xf32>
    %323 = arith.mulf %322, %321 : vector<8x1xf32>
    %324 = arith.addf %268, %323 : vector<8x1xf32>
    %325 = arith.subf %285, %300 : vector<8x1xf32>
    %326 = arith.addf %325, %319 : vector<8x1xf32>
    %327 = vector.broadcast %278 : f32 to vector<8x1xf32>
    %328 = arith.mulf %327, %326 : vector<8x1xf32>
    %329 = arith.addf %277, %328 : vector<8x1xf32>
    %330 = arith.mulf %324, %329 : vector<8x1xf32>
    %331 = arith.mulf %43, %324 : vector<8x1xf32>
    %332 = arith.mulf %44, %330 : vector<8x1xf32>
    %333 = arith.subf %331, %332 : vector<8x1xf32>
    %334 = arith.mulf %46, %330 : vector<8x1xf32>
    %335 = arith.mulf %45, %329 : vector<8x1xf32>
    %336 = arith.subf %334, %335 : vector<8x1xf32>
    %cst_59 = arith.constant 1.250000e-01 : f32
    %337 = arith.mulf %278, %cst_59 : f32
    %338 = arith.addf %297, %316 : vector<8x1xf32>
    %cst_60 = arith.constant 3.000000e+00 : f32
    %339 = vector.broadcast %cst_60 : f32 to vector<8x1xf32>
    %340 = arith.mulf %339, %338 : vector<8x1xf32>
    %341 = arith.addf %282, %340 : vector<8x1xf32>
    %342 = arith.addf %341, %333 : vector<8x1xf32>
    %343 = vector.broadcast %337 : f32 to vector<8x1xf32>
    %344 = arith.mulf %343, %342 : vector<8x1xf32>
    %345 = arith.addf %268, %344 : vector<8x1xf32>
    %cst_61 = arith.constant 1.250000e-01 : f32
    %346 = arith.mulf %278, %cst_61 : f32
    %347 = arith.addf %300, %319 : vector<8x1xf32>
    %cst_62 = arith.constant 3.000000e+00 : f32
    %348 = vector.broadcast %cst_62 : f32 to vector<8x1xf32>
    %349 = arith.mulf %348, %347 : vector<8x1xf32>
    %350 = arith.addf %285, %349 : vector<8x1xf32>
    %351 = arith.addf %350, %336 : vector<8x1xf32>
    %352 = vector.broadcast %346 : f32 to vector<8x1xf32>
    %353 = arith.mulf %352, %351 : vector<8x1xf32>
    %354 = arith.addf %277, %353 : vector<8x1xf32>
    %c4 = arith.constant 4 : index
    %355 = memref.load %arg0[%c4] : memref<7xf32, #tpu.memory_space<smem>>
    %356 = arith.mulf %345, %354 : vector<8x1xf32>
    %357 = arith.mulf %43, %345 : vector<8x1xf32>
    %358 = arith.mulf %44, %356 : vector<8x1xf32>
    %359 = arith.subf %357, %358 : vector<8x1xf32>
    %360 = arith.mulf %46, %356 : vector<8x1xf32>
    %361 = arith.mulf %45, %354 : vector<8x1xf32>
    %362 = arith.subf %360, %361 : vector<8x1xf32>
    %cst_63 = arith.constant 0.333333343 : f32
    %363 = arith.mulf %355, %cst_63 : f32
    %364 = vector.broadcast %363 : f32 to vector<8x1xf32>
    %365 = arith.mulf %364, %359 : vector<8x1xf32>
    %366 = arith.addf %345, %365 : vector<8x1xf32>
    %cst_64 = arith.constant 0.333333343 : f32
    %367 = arith.mulf %355, %cst_64 : f32
    %368 = vector.broadcast %367 : f32 to vector<8x1xf32>
    %369 = arith.mulf %368, %362 : vector<8x1xf32>
    %370 = arith.addf %354, %369 : vector<8x1xf32>
    %371 = arith.mulf %366, %370 : vector<8x1xf32>
    %372 = arith.mulf %43, %366 : vector<8x1xf32>
    %373 = arith.mulf %44, %371 : vector<8x1xf32>
    %374 = arith.subf %372, %373 : vector<8x1xf32>
    %375 = arith.mulf %46, %371 : vector<8x1xf32>
    %376 = arith.mulf %45, %370 : vector<8x1xf32>
    %377 = arith.subf %375, %376 : vector<8x1xf32>
    %cst_65 = arith.constant 0.333333343 : f32
    %378 = vector.broadcast %cst_65 : f32 to vector<8x1xf32>
    %379 = arith.mulf %378, %359 : vector<8x1xf32>
    %380 = arith.subf %374, %379 : vector<8x1xf32>
    %381 = vector.broadcast %355 : f32 to vector<8x1xf32>
    %382 = arith.mulf %381, %380 : vector<8x1xf32>
    %383 = arith.addf %345, %382 : vector<8x1xf32>
    %cst_66 = arith.constant 0.333333343 : f32
    %384 = vector.broadcast %cst_66 : f32 to vector<8x1xf32>
    %385 = arith.mulf %384, %362 : vector<8x1xf32>
    %386 = arith.subf %377, %385 : vector<8x1xf32>
    %387 = vector.broadcast %355 : f32 to vector<8x1xf32>
    %388 = arith.mulf %387, %386 : vector<8x1xf32>
    %389 = arith.addf %354, %388 : vector<8x1xf32>
    %390 = arith.mulf %383, %389 : vector<8x1xf32>
    %391 = arith.mulf %43, %383 : vector<8x1xf32>
    %392 = arith.mulf %44, %390 : vector<8x1xf32>
    %393 = arith.subf %391, %392 : vector<8x1xf32>
    %394 = arith.mulf %46, %390 : vector<8x1xf32>
    %395 = arith.mulf %45, %389 : vector<8x1xf32>
    %396 = arith.subf %394, %395 : vector<8x1xf32>
    %397 = arith.subf %359, %374 : vector<8x1xf32>
    %398 = arith.addf %397, %393 : vector<8x1xf32>
    %399 = vector.broadcast %355 : f32 to vector<8x1xf32>
    %400 = arith.mulf %399, %398 : vector<8x1xf32>
    %401 = arith.addf %345, %400 : vector<8x1xf32>
    %402 = arith.subf %362, %377 : vector<8x1xf32>
    %403 = arith.addf %402, %396 : vector<8x1xf32>
    %404 = vector.broadcast %355 : f32 to vector<8x1xf32>
    %405 = arith.mulf %404, %403 : vector<8x1xf32>
    %406 = arith.addf %354, %405 : vector<8x1xf32>
    %407 = arith.mulf %401, %406 : vector<8x1xf32>
    %408 = arith.mulf %43, %401 : vector<8x1xf32>
    %409 = arith.mulf %44, %407 : vector<8x1xf32>
    %410 = arith.subf %408, %409 : vector<8x1xf32>
    %411 = arith.mulf %46, %407 : vector<8x1xf32>
    %412 = arith.mulf %45, %406 : vector<8x1xf32>
    %413 = arith.subf %411, %412 : vector<8x1xf32>
    %cst_67 = arith.constant 1.250000e-01 : f32
    %414 = arith.mulf %355, %cst_67 : f32
    %415 = arith.addf %374, %393 : vector<8x1xf32>
    %cst_68 = arith.constant 3.000000e+00 : f32
    %416 = vector.broadcast %cst_68 : f32 to vector<8x1xf32>
    %417 = arith.mulf %416, %415 : vector<8x1xf32>
    %418 = arith.addf %359, %417 : vector<8x1xf32>
    %419 = arith.addf %418, %410 : vector<8x1xf32>
    %420 = vector.broadcast %414 : f32 to vector<8x1xf32>
    %421 = arith.mulf %420, %419 : vector<8x1xf32>
    %422 = arith.addf %345, %421 : vector<8x1xf32>
    %cst_69 = arith.constant 1.250000e-01 : f32
    %423 = arith.mulf %355, %cst_69 : f32
    %424 = arith.addf %377, %396 : vector<8x1xf32>
    %cst_70 = arith.constant 3.000000e+00 : f32
    %425 = vector.broadcast %cst_70 : f32 to vector<8x1xf32>
    %426 = arith.mulf %425, %424 : vector<8x1xf32>
    %427 = arith.addf %362, %426 : vector<8x1xf32>
    %428 = arith.addf %427, %413 : vector<8x1xf32>
    %429 = vector.broadcast %423 : f32 to vector<8x1xf32>
    %430 = arith.mulf %429, %428 : vector<8x1xf32>
    %431 = arith.addf %354, %430 : vector<8x1xf32>
    %c5 = arith.constant 5 : index
    %432 = memref.load %arg0[%c5] : memref<7xf32, #tpu.memory_space<smem>>
    %433 = arith.mulf %422, %431 : vector<8x1xf32>
    %434 = arith.mulf %43, %422 : vector<8x1xf32>
    %435 = arith.mulf %44, %433 : vector<8x1xf32>
    %436 = arith.subf %434, %435 : vector<8x1xf32>
    %437 = arith.mulf %46, %433 : vector<8x1xf32>
    %438 = arith.mulf %45, %431 : vector<8x1xf32>
    %439 = arith.subf %437, %438 : vector<8x1xf32>
    %cst_71 = arith.constant 0.333333343 : f32
    %440 = arith.mulf %432, %cst_71 : f32
    %441 = vector.broadcast %440 : f32 to vector<8x1xf32>
    %442 = arith.mulf %441, %436 : vector<8x1xf32>
    %443 = arith.addf %422, %442 : vector<8x1xf32>
    %cst_72 = arith.constant 0.333333343 : f32
    %444 = arith.mulf %432, %cst_72 : f32
    %445 = vector.broadcast %444 : f32 to vector<8x1xf32>
    %446 = arith.mulf %445, %439 : vector<8x1xf32>
    %447 = arith.addf %431, %446 : vector<8x1xf32>
    %448 = arith.mulf %443, %447 : vector<8x1xf32>
    %449 = arith.mulf %43, %443 : vector<8x1xf32>
    %450 = arith.mulf %44, %448 : vector<8x1xf32>
    %451 = arith.subf %449, %450 : vector<8x1xf32>
    %452 = arith.mulf %46, %448 : vector<8x1xf32>
    %453 = arith.mulf %45, %447 : vector<8x1xf32>
    %454 = arith.subf %452, %453 : vector<8x1xf32>
    %cst_73 = arith.constant 0.333333343 : f32
    %455 = vector.broadcast %cst_73 : f32 to vector<8x1xf32>
    %456 = arith.mulf %455, %436 : vector<8x1xf32>
    %457 = arith.subf %451, %456 : vector<8x1xf32>
    %458 = vector.broadcast %432 : f32 to vector<8x1xf32>
    %459 = arith.mulf %458, %457 : vector<8x1xf32>
    %460 = arith.addf %422, %459 : vector<8x1xf32>
    %cst_74 = arith.constant 0.333333343 : f32
    %461 = vector.broadcast %cst_74 : f32 to vector<8x1xf32>
    %462 = arith.mulf %461, %439 : vector<8x1xf32>
    %463 = arith.subf %454, %462 : vector<8x1xf32>
    %464 = vector.broadcast %432 : f32 to vector<8x1xf32>
    %465 = arith.mulf %464, %463 : vector<8x1xf32>
    %466 = arith.addf %431, %465 : vector<8x1xf32>
    %467 = arith.mulf %460, %466 : vector<8x1xf32>
    %468 = arith.mulf %43, %460 : vector<8x1xf32>
    %469 = arith.mulf %44, %467 : vector<8x1xf32>
    %470 = arith.subf %468, %469 : vector<8x1xf32>
    %471 = arith.mulf %46, %467 : vector<8x1xf32>
    %472 = arith.mulf %45, %466 : vector<8x1xf32>
    %473 = arith.subf %471, %472 : vector<8x1xf32>
    %474 = arith.subf %436, %451 : vector<8x1xf32>
    %475 = arith.addf %474, %470 : vector<8x1xf32>
    %476 = vector.broadcast %432 : f32 to vector<8x1xf32>
    %477 = arith.mulf %476, %475 : vector<8x1xf32>
    %478 = arith.addf %422, %477 : vector<8x1xf32>
    %479 = arith.subf %439, %454 : vector<8x1xf32>
    %480 = arith.addf %479, %473 : vector<8x1xf32>
    %481 = vector.broadcast %432 : f32 to vector<8x1xf32>
    %482 = arith.mulf %481, %480 : vector<8x1xf32>
    %483 = arith.addf %431, %482 : vector<8x1xf32>
    %484 = arith.mulf %478, %483 : vector<8x1xf32>
    %485 = arith.mulf %43, %478 : vector<8x1xf32>
    %486 = arith.mulf %44, %484 : vector<8x1xf32>
    %487 = arith.subf %485, %486 : vector<8x1xf32>
    %488 = arith.mulf %46, %484 : vector<8x1xf32>
    %489 = arith.mulf %45, %483 : vector<8x1xf32>
    %490 = arith.subf %488, %489 : vector<8x1xf32>
    %cst_75 = arith.constant 1.250000e-01 : f32
    %491 = arith.mulf %432, %cst_75 : f32
    %492 = arith.addf %451, %470 : vector<8x1xf32>
    %cst_76 = arith.constant 3.000000e+00 : f32
    %493 = vector.broadcast %cst_76 : f32 to vector<8x1xf32>
    %494 = arith.mulf %493, %492 : vector<8x1xf32>
    %495 = arith.addf %436, %494 : vector<8x1xf32>
    %496 = arith.addf %495, %487 : vector<8x1xf32>
    %497 = vector.broadcast %491 : f32 to vector<8x1xf32>
    %498 = arith.mulf %497, %496 : vector<8x1xf32>
    %499 = arith.addf %422, %498 : vector<8x1xf32>
    %cst_77 = arith.constant 1.250000e-01 : f32
    %500 = arith.mulf %432, %cst_77 : f32
    %501 = arith.addf %454, %473 : vector<8x1xf32>
    %cst_78 = arith.constant 3.000000e+00 : f32
    %502 = vector.broadcast %cst_78 : f32 to vector<8x1xf32>
    %503 = arith.mulf %502, %501 : vector<8x1xf32>
    %504 = arith.addf %439, %503 : vector<8x1xf32>
    %505 = arith.addf %504, %490 : vector<8x1xf32>
    %506 = vector.broadcast %500 : f32 to vector<8x1xf32>
    %507 = arith.mulf %506, %505 : vector<8x1xf32>
    %508 = arith.addf %431, %507 : vector<8x1xf32>
    %c6 = arith.constant 6 : index
    %509 = memref.load %arg0[%c6] : memref<7xf32, #tpu.memory_space<smem>>
    %510 = arith.mulf %499, %508 : vector<8x1xf32>
    %511 = arith.mulf %43, %499 : vector<8x1xf32>
    %512 = arith.mulf %44, %510 : vector<8x1xf32>
    %513 = arith.subf %511, %512 : vector<8x1xf32>
    %514 = arith.mulf %46, %510 : vector<8x1xf32>
    %515 = arith.mulf %45, %508 : vector<8x1xf32>
    %516 = arith.subf %514, %515 : vector<8x1xf32>
    %cst_79 = arith.constant 0.333333343 : f32
    %517 = arith.mulf %509, %cst_79 : f32
    %518 = vector.broadcast %517 : f32 to vector<8x1xf32>
    %519 = arith.mulf %518, %513 : vector<8x1xf32>
    %520 = arith.addf %499, %519 : vector<8x1xf32>
    %cst_80 = arith.constant 0.333333343 : f32
    %521 = arith.mulf %509, %cst_80 : f32
    %522 = vector.broadcast %521 : f32 to vector<8x1xf32>
    %523 = arith.mulf %522, %516 : vector<8x1xf32>
    %524 = arith.addf %508, %523 : vector<8x1xf32>
    %525 = arith.mulf %520, %524 : vector<8x1xf32>
    %526 = arith.mulf %43, %520 : vector<8x1xf32>
    %527 = arith.mulf %44, %525 : vector<8x1xf32>
    %528 = arith.subf %526, %527 : vector<8x1xf32>
    %529 = arith.mulf %46, %525 : vector<8x1xf32>
    %530 = arith.mulf %45, %524 : vector<8x1xf32>
    %531 = arith.subf %529, %530 : vector<8x1xf32>
    %cst_81 = arith.constant 0.333333343 : f32
    %532 = vector.broadcast %cst_81 : f32 to vector<8x1xf32>
    %533 = arith.mulf %532, %513 : vector<8x1xf32>
    %534 = arith.subf %528, %533 : vector<8x1xf32>
    %535 = vector.broadcast %509 : f32 to vector<8x1xf32>
    %536 = arith.mulf %535, %534 : vector<8x1xf32>
    %537 = arith.addf %499, %536 : vector<8x1xf32>
    %cst_82 = arith.constant 0.333333343 : f32
    %538 = vector.broadcast %cst_82 : f32 to vector<8x1xf32>
    %539 = arith.mulf %538, %516 : vector<8x1xf32>
    %540 = arith.subf %531, %539 : vector<8x1xf32>
    %541 = vector.broadcast %509 : f32 to vector<8x1xf32>
    %542 = arith.mulf %541, %540 : vector<8x1xf32>
    %543 = arith.addf %508, %542 : vector<8x1xf32>
    %544 = arith.mulf %537, %543 : vector<8x1xf32>
    %545 = arith.mulf %43, %537 : vector<8x1xf32>
    %546 = arith.mulf %44, %544 : vector<8x1xf32>
    %547 = arith.subf %545, %546 : vector<8x1xf32>
    %548 = arith.mulf %46, %544 : vector<8x1xf32>
    %549 = arith.mulf %45, %543 : vector<8x1xf32>
    %550 = arith.subf %548, %549 : vector<8x1xf32>
    %551 = arith.subf %513, %528 : vector<8x1xf32>
    %552 = arith.addf %551, %547 : vector<8x1xf32>
    %553 = vector.broadcast %509 : f32 to vector<8x1xf32>
    %554 = arith.mulf %553, %552 : vector<8x1xf32>
    %555 = arith.addf %499, %554 : vector<8x1xf32>
    %556 = arith.subf %516, %531 : vector<8x1xf32>
    %557 = arith.addf %556, %550 : vector<8x1xf32>
    %558 = vector.broadcast %509 : f32 to vector<8x1xf32>
    %559 = arith.mulf %558, %557 : vector<8x1xf32>
    %560 = arith.addf %508, %559 : vector<8x1xf32>
    %561 = arith.mulf %555, %560 : vector<8x1xf32>
    %562 = arith.mulf %43, %555 : vector<8x1xf32>
    %563 = arith.mulf %44, %561 : vector<8x1xf32>
    %564 = arith.subf %562, %563 : vector<8x1xf32>
    %565 = arith.mulf %46, %561 : vector<8x1xf32>
    %566 = arith.mulf %45, %560 : vector<8x1xf32>
    %567 = arith.subf %565, %566 : vector<8x1xf32>
    %cst_83 = arith.constant 1.250000e-01 : f32
    %568 = arith.mulf %509, %cst_83 : f32
    %569 = arith.addf %528, %547 : vector<8x1xf32>
    %cst_84 = arith.constant 3.000000e+00 : f32
    %570 = vector.broadcast %cst_84 : f32 to vector<8x1xf32>
    %571 = arith.mulf %570, %569 : vector<8x1xf32>
    %572 = arith.addf %513, %571 : vector<8x1xf32>
    %573 = arith.addf %572, %564 : vector<8x1xf32>
    %574 = vector.broadcast %568 : f32 to vector<8x1xf32>
    %575 = arith.mulf %574, %573 : vector<8x1xf32>
    %576 = arith.addf %499, %575 : vector<8x1xf32>
    %cst_85 = arith.constant 1.250000e-01 : f32
    %577 = arith.mulf %509, %cst_85 : f32
    %578 = arith.addf %531, %550 : vector<8x1xf32>
    %cst_86 = arith.constant 3.000000e+00 : f32
    %579 = vector.broadcast %cst_86 : f32 to vector<8x1xf32>
    %580 = arith.mulf %579, %578 : vector<8x1xf32>
    %581 = arith.addf %516, %580 : vector<8x1xf32>
    %582 = arith.addf %581, %567 : vector<8x1xf32>
    %583 = vector.broadcast %577 : f32 to vector<8x1xf32>
    %584 = arith.mulf %583, %582 : vector<8x1xf32>
    %585 = arith.addf %508, %584 : vector<8x1xf32>
    %586 = tpu.concatenate %41, %114, %191, %268, %345, %422, %499, %576 in 0 : vector<8x1xf32>, vector<8x1xf32>, vector<8x1xf32>, vector<8x1xf32>, vector<8x1xf32>, vector<8x1xf32>, vector<8x1xf32>, vector<8x1xf32> -> vector<64x1xf32>
    %587 = tpu.concatenate %42, %123, %200, %277, %354, %431, %508, %585 in 0 : vector<8x1xf32>, vector<8x1xf32>, vector<8x1xf32>, vector<8x1xf32>, vector<8x1xf32>, vector<8x1xf32>, vector<8x1xf32>, vector<8x1xf32> -> vector<64x1xf32>
    %588 = tpu.concatenate %586, %587 in 1 : vector<64x1xf32>, vector<64x1xf32> -> vector<64x2xf32>
    %c0_87 = arith.constant 0 : index
    %c0_88 = arith.constant 0 : index
    %589 = vector.load %arg16[%c0_87, %c0_88] : memref<64x2xf32, #tpu.memory_space<vmem>>, vector<64x2xf32>
    tpu.vector_store %arg16[%c0_87, %c0_88], %588 {strides = array<i32>} : memref<64x2xf32, #tpu.memory_space<vmem>>, vector<64x2xf32>,
    %c0_89 = arith.constant 0 : index
    %c0_90 = arith.constant 0 : index
    %590 = vector.load %arg11[%c0_89, %c0_90] : memref<2x256xf32, #tpu.memory_space<vmem>>, vector<1x256xf32>
    %591 = vector.broadcast %586 : vector<64x1xf32> to vector<64x256xf32>
    %592 = vector.broadcast %590 : vector<1x256xf32> to vector<64x256xf32>
    %593 = arith.mulf %591, %592 : vector<64x256xf32>
    %c1_91 = arith.constant 1 : index
    %c0_92 = arith.constant 0 : index
    %594 = vector.load %arg11[%c1_91, %c0_92] : memref<2x256xf32, #tpu.memory_space<vmem>>, vector<1x256xf32>
    %595 = vector.broadcast %587 : vector<64x1xf32> to vector<64x256xf32>
    %596 = vector.broadcast %594 : vector<1x256xf32> to vector<64x256xf32>
    %597 = arith.mulf %595, %596 : vector<64x256xf32>
    %598 = arith.addf %593, %597 : vector<64x256xf32>
    %c0_93 = arith.constant 0 : index
    %c0_94 = arith.constant 0 : index
    %599 = vector.load %arg12[%c0_93, %c0_94] : memref<1x256xf32, #tpu.memory_space<vmem>>, vector<1x256xf32>
    %600 = vector.broadcast %599 : vector<1x256xf32> to vector<64x256xf32>
    %601 = arith.addf %598, %600 : vector<64x256xf32>
    %cst_95 = arith.constant 0.000000e+00 : f32
    %602 = vector.broadcast %cst_95 : f32 to vector<64x256xf32>
    %603 = arith.maximumf %601, %602 : vector<64x256xf32>
    %c0_96 = arith.constant 0 : index
    %c0_97 = arith.constant 0 : index
    %604 = vector.load %arg13[%c0_96, %c0_97] : memref<256x16xf32, #tpu.memory_space<vmem>>, vector<256x16xf32>
    %cst_98 = arith.constant dense<0.000000e+00> : vector<64x16xf32>
    %605 = tpu.matmul %603, %604, %cst_98 {dimension_numbers = #tpu.dot_dimension_numbers<[1], [0], [0], [1], [0, 0, 1, 1], [], []>} : vector<64x256xf32>, vector<256x16xf32>, vector<64x16xf32> -> vector<64x16xf32>
    %c0_99 = arith.constant 0 : index
    %c0_100 = arith.constant 0 : index
    %606 = vector.load %arg14[%c0_99, %c0_100] : memref<1x16xf32, #tpu.memory_space<vmem>>, vector<1x16xf32>
    %607 = vector.broadcast %606 : vector<1x16xf32> to vector<64x16xf32>
    %608 = arith.addf %605, %607 : vector<64x16xf32>
    %c0_101 = arith.constant 0 : index
    %c0_102 = arith.constant 0 : index
    %609 = vector.load %arg15[%c0_101, %c0_102] : memref<64x16xf32, #tpu.memory_space<vmem>>, vector<64x16xf32>
    tpu.vector_store %arg15[%c0_101, %c0_102], %608 {strides = array<i32>} : memref<64x16xf32, #tpu.memory_space<vmem>>, vector<64x16xf32>,
    return
  }
}

</mosaic_0001>

<llo_original>
// kernel: tpu_custom_call.1
$region0: #{tpu_custom_call.1}
  #allocation0 [shape = 'u32[]', space=smem, size = 0x4, offset = 0x4, fixed_abs, tag = 'smem constant byte address 0x4 - core index']
  #allocation1 [shape = 'u32[72,128]{1,0:T(1,128)}', space=vmem, size = 0x9000, scoped, tag = 'internal scratch']
  %s0 = inlined_call_operand.vmem [shape: f32[7], index: 0, kind: input, shape index: {}]
  %s1 = inlined_call_operand.vmem [shape: f32[8,32], index: 1, kind: input, shape index: {}]
  %s2 = inlined_call_operand.vmem [shape: f32[8,32], index: 2, kind: input, shape index: {}]
  %s3 = inlined_call_operand.vmem [shape: f32[32,256], index: 3, kind: input, shape index: {}]
  %s4 = inlined_call_operand.vmem [shape: f32[1,256], index: 4, kind: input, shape index: {}]
  %s5 = inlined_call_operand.vmem [shape: f32[256,2], index: 5, kind: input, shape index: {}]
  %s6 = inlined_call_operand.vmem [shape: f32[1,2], index: 6, kind: input, shape index: {}]
  %s7 = inlined_call_operand.vmem [shape: f32[32,256], index: 7, kind: input, shape index: {}]
  %s8 = inlined_call_operand.vmem [shape: f32[1,256], index: 8, kind: input, shape index: {}]
  %s9 = inlined_call_operand.vmem [shape: f32[256,4], index: 9, kind: input, shape index: {}]
  %s10 = inlined_call_operand.vmem [shape: f32[1,4], index: 10, kind: input, shape index: {}]
  %s11 = inlined_call_operand.vmem [shape: f32[2,256], index: 11, kind: input, shape index: {}]
  %s12 = inlined_call_operand.vmem [shape: f32[1,256], index: 12, kind: input, shape index: {}]
  %s13 = inlined_call_operand.vmem [shape: f32[256,16], index: 13, kind: input, shape index: {}]
  %s14 = inlined_call_operand.vmem [shape: f32[1,16], index: 14, kind: input, shape index: {}]
  %s15 = inlined_call_operand.vmem [shape: f32[64,16], index: 15, kind: output, shape index: {0}]
  %s16 = inlined_call_operand.vmem [shape: f32[64,2], index: 16, kind: output, shape index: {1}]
  %s17 = inlined_call_operand.vmem [shape: f32[8,4], index: 17, kind: output, shape index: {2}]
  %18 = xla_tuple %s15, %s16, %s17
  %s19 = sld [smem:[#allocation0]]
  $region90: #{tpu_custom_call.1} parent=0
    _
  %s21 = ssub.s32 1, %s19
  %s22 = scalar_select 0, %s21, %s19
  $region1: #{tpu_custom_call.1} parent=0
    #allocation2 [shape = 'u8[512]{0}', space=smem, size = 0x200, scoped, tag = 'input window, operand 0, single buffered']
    #allocation3 [shape = 's32[1]{0}', space=sflag, size = 0x4, scoped, tag = 'scoped memory for tpu_custom_call.1']
    %23 = vsyncpa [#allocation3], 0
    // Predicated region
    $region2: #{tpu_custom_call.1} parent=1 // pred_check
      _
    $region3: #{tpu_custom_call.1} parent=1 // pred_check_branch
      %25 = sbr.rel (0) target = $region5
    $region4: #{tpu_custom_call.1} parent=1 // pred_region
      %27 = vsyncadd [#allocation3], 0
      %s29 = sshll.u32 %s0, 4
      %s30 = int_to_ptr.vmem [resolvable:$true] %s29
      %32 = dma.vmem_to_smem %s30, 16, [#allocation2], [#allocation3]
    $region5: #{tpu_custom_call.1} parent=1 // pred_fallthru
      _
    // Predicated region
    $region6: #{tpu_custom_call.1} parent=1 // pred_check
      _
    $region7: #{tpu_custom_call.1} parent=1 // pred_check_branch
      %34 = sbr.rel (0) target = $region9
    $region8: #{tpu_custom_call.1} parent=1 // pred_region
      _
    $region9: #{tpu_custom_call.1} parent=1 // pred_fallthru
      _
    // Predicated region
    $region10: #{tpu_custom_call.1} parent=1 // pred_check
      _
    $region11: #{tpu_custom_call.1} parent=1 // pred_check_branch
      %36 = sbr.rel (0) target = $region13
    $region12: #{tpu_custom_call.1} parent=1 // pred_region
      _
    $region13: #{tpu_custom_call.1} parent=1 // pred_fallthru
      _
    // Predicated region
    $region14: #{tpu_custom_call.1} parent=1 // pred_check
      _
    $region15: #{tpu_custom_call.1} parent=1 // pred_check_branch
      %38 = sbr.rel (0) target = $region17
    $region16: #{tpu_custom_call.1} parent=1 // pred_region
      _
    $region17: #{tpu_custom_call.1} parent=1 // pred_fallthru
      _
    // Predicated region
    $region18: #{tpu_custom_call.1} parent=1 // pred_check
      _
    $region19: #{tpu_custom_call.1} parent=1 // pred_check_branch
      %40 = sbr.rel (0) target = $region21
    $region20: #{tpu_custom_call.1} parent=1 // pred_region
      _
    $region21: #{tpu_custom_call.1} parent=1 // pred_fallthru
      _
    // Predicated region
    $region22: #{tpu_custom_call.1} parent=1 // pred_check
      _
    $region23: #{tpu_custom_call.1} parent=1 // pred_check_branch
      %42 = sbr.rel (0) target = $region25
    $region24: #{tpu_custom_call.1} parent=1 // pred_region
      _
    $region25: #{tpu_custom_call.1} parent=1 // pred_fallthru
      _
    // Predicated region
    $region26: #{tpu_custom_call.1} parent=1 // pred_check
      _
    $region27: #{tpu_custom_call.1} parent=1 // pred_check_branch
      %44 = sbr.rel (0) target = $region29
    $region28: #{tpu_custom_call.1} parent=1 // pred_region
      _
    $region29: #{tpu_custom_call.1} parent=1 // pred_fallthru
      _
    // Predicated region
    $region30: #{tpu_custom_call.1} parent=1 // pred_check
      _
    $region31: #{tpu_custom_call.1} parent=1 // pred_check_branch
      %46 = sbr.rel (0) target = $region33
    $region32: #{tpu_custom_call.1} parent=1 // pred_region
      _
    $region33: #{tpu_custom_call.1} parent=1 // pred_fallthru
      _
    // Predicated region
    $region34: #{tpu_custom_call.1} parent=1 // pred_check
      _
    $region35: #{tpu_custom_call.1} parent=1 // pred_check_branch
      %48 = sbr.rel (0) target = $region37
    $region36: #{tpu_custom_call.1} parent=1 // pred_region
      _
    $region37: #{tpu_custom_call.1} parent=1 // pred_fallthru
      _
    // Predicated region
    $region38: #{tpu_custom_call.1} parent=1 // pred_check
      _
    $region39: #{tpu_custom_call.1} parent=1 // pred_check_branch
      %50 = sbr.rel (0) target = $region41
    $region40: #{tpu_custom_call.1} parent=1 // pred_region
      _
    $region41: #{tpu_custom_call.1} parent=1 // pred_fallthru
      _
    // Predicated region
    $region42: #{tpu_custom_call.1} parent=1 // pred_check
      _
    $region43: #{tpu_custom_call.1} parent=1 // pred_check_branch
      %52 = sbr.rel (0) target = $region45
    $region44: #{tpu_custom_call.1} parent=1 // pred_region
      _
    $region45: #{tpu_custom_call.1} parent=1 // pred_fallthru
      _
    // Predicated region
    $region46: #{tpu_custom_call.1} parent=1 // pred_check
      _
    $region47: #{tpu_custom_call.1} parent=1 // pred_check_branch
      %54 = sbr.rel (0) target = $region49
    $region48: #{tpu_custom_call.1} parent=1 // pred_region
      _
    $region49: #{tpu_custom_call.1} parent=1 // pred_fallthru
      _
    // Predicated region
    $region50: #{tpu_custom_call.1} parent=1 // pred_check
      _
    $region51: #{tpu_custom_call.1} parent=1 // pred_check_branch
      %56 = sbr.rel (0) target = $region53
    $region52: #{tpu_custom_call.1} parent=1 // pred_region
      _
    $region53: #{tpu_custom_call.1} parent=1 // pred_fallthru
      _
    // Predicated region
    $region54: #{tpu_custom_call.1} parent=1 // pred_check
      _
    $region55: #{tpu_custom_call.1} parent=1 // pred_check_branch
      %58 = sbr.rel (0) target = $region57
    $region56: #{tpu_custom_call.1} parent=1 // pred_region
      _
    $region57: #{tpu_custom_call.1} parent=1 // pred_fallthru
      _
    // Predicated region
    $region58: #{tpu_custom_call.1} parent=1 // pred_check
      _
    $region59: #{tpu_custom_call.1} parent=1 // pred_check_branch
      %60 = sbr.rel (0) target = $region61
    $region60: #{tpu_custom_call.1} parent=1 // pred_region
      _
    $region61: #{tpu_custom_call.1} parent=1 // pred_fallthru
      _
    // Predicated region
    $region62: #{tpu_custom_call.1} parent=1 // pred_check
      _
    $region63: #{tpu_custom_call.1} parent=1 // pred_check_branch
      %62 = sbr.rel (0) target = $region65
    $region64: #{tpu_custom_call.1} parent=1 // pred_region
      %64 = dma.done [#allocation3], 16
    $region65: #{tpu_custom_call.1} parent=1 // pred_fallthru
      _
    %65 = sfence
    %v66 = vld [vmem:[%s1] sm:$0xff]
    %v67 = vld [vmem:[%s3] sm:$0xff]
    %v68 = vld [vmem:[%s3 + $0x8] sm:$0xff]
    %v69 = vld [vmem:[%s3 + $0x10] sm:$0xff]
    %v70 = vld [vmem:[%s3 + $0x18] sm:$0xff]
    %v71 = vld [vmem:[%s3 + $0x20] sm:$0xff]
    %v72 = vld [vmem:[%s3 + $0x28] sm:$0xff]
    %v73 = vld [vmem:[%s3 + $0x30] sm:$0xff]
    %v74 = vld [vmem:[%s3 + $0x38] sm:$0xff]
    %v75 = vld [vmem:[%s4] sm:$0x3]
    %v76 = vld [vmem:[%s5] sm:$0xff]
    %v77 = vld [vmem:[%s5 + $0x8] sm:$0xff]
    %v78 = vld [vmem:[%s5 + $0x10] sm:$0xff]
    %v79 = vld [vmem:[%s5 + $0x18] sm:$0xff]
    %v80 = vld [vmem:[%s5 + $0x20] sm:$0xff]
    %v81 = vld [vmem:[%s5 + $0x28] sm:$0xff]
    %v82 = vld [vmem:[%s5 + $0x30] sm:$0xff]
    %v83 = vld [vmem:[%s5 + $0x38] sm:$0xff]
    %v84 = vld [vmem:[%s5 + $0x40] sm:$0xff]
    %v85 = vld [vmem:[%s5 + $0x48] sm:$0xff]
    %v86 = vld [vmem:[%s5 + $0x50] sm:$0xff]
    %v87 = vld [vmem:[%s5 + $0x58] sm:$0xff]
    %v88 = vld [vmem:[%s5 + $0x60] sm:$0xff]
    %v89 = vld [vmem:[%s5 + $0x68] sm:$0xff]
    %v90 = vld [vmem:[%s5 + $0x70] sm:$0xff]
    %v91 = vld [vmem:[%s5 + $0x78] sm:$0xff]
    %v92 = vld [vmem:[%s5 + $0x80] sm:$0xff]
    %v93 = vld [vmem:[%s5 + $0x88] sm:$0xff]
    %v94 = vld [vmem:[%s5 + $0x90] sm:$0xff]
    %v95 = vld [vmem:[%s5 + $0x98] sm:$0xff]
    %v96 = vld [vmem:[%s5 + $0xa0] sm:$0xff]
    %v97 = vld [vmem:[%s5 + $0xa8] sm:$0xff]
    %v98 = vld [vmem:[%s5 + $0xb0] sm:$0xff]
    %v99 = vld [vmem:[%s5 + $0xb8] sm:$0xff]
    %v100 = vld [vmem:[%s5 + $0xc0] sm:$0xff]
    %v101 = vld [vmem:[%s5 + $0xc8] sm:$0xff]
    %v102 = vld [vmem:[%s5 + $0xd0] sm:$0xff]
    %v103 = vld [vmem:[%s5 + $0xd8] sm:$0xff]
    %v104 = vld [vmem:[%s5 + $0xe0] sm:$0xff]
    %v105 = vld [vmem:[%s5 + $0xe8] sm:$0xff]
    %v106 = vld [vmem:[%s5 + $0xf0] sm:$0xff]
    %v107 = vld [vmem:[%s5 + $0xf8] sm:$0xff]
    %v108 = vld [vmem:[%s6] sm:$0x1]
    %v110 = vperm.slane %v75, 0
    %v111 = vperm.slane %v75, 1
    %vm114 = vcmask 261120
    %v116 = vsel %vm114, %v66, 0
    %118 = vmatpush.msra.mxu0 0.0
    %119 = vmatpush.msra.mxu0 0.0
    %120 = vmatpush.msra.mxu0 0.0
    %121 = vmatpush.msra.mxu0 0.0
    %122 = vmatpush.msra.mxu0 0.0
    %123 = vmatpush.msra.mxu0 0.0
    %124 = vmatpush.msra.mxu0 0.0
    %125 = vmatpush.msra.mxu0 0.0
    %126 = vmatpush.msra.mxu0 0.0
    %127 = vmatpush.msra.mxu0 0.0
    %128 = vmatpush.msra.mxu0 0.0
    %129 = vmatpush.msra.mxu0 0.0
    %130 = vmatpush.msra.mxu0 %v73
    %131 = vmatpush.msra.mxu0 %v71
    %132 = vmatpush.msra.mxu0 %v69
    %133 = vmatpush.msra.mxu0 %v67
    %134 = vmatmul.f32.gmra.mxu0 %v116
    %v135 = vpop.f32.mrf.mxu0
    %v136 = vadd.f32 %v110, %v135
    %137 = vdwg.mxu0
    %138 = vmatpush.msra.mxu0 0.0
    %139 = vmatpush.msra.mxu0 0.0
    %140 = vmatpush.msra.mxu0 0.0
    %141 = vmatpush.msra.mxu0 0.0
    %142 = vmatpush.msra.mxu0 0.0
    %143 = vmatpush.msra.mxu0 0.0
    %144 = vmatpush.msra.mxu0 0.0
    %145 = vmatpush.msra.mxu0 0.0
    %146 = vmatpush.msra.mxu0 0.0
    %147 = vmatpush.msra.mxu0 0.0
    %148 = vmatpush.msra.mxu0 0.0
    %149 = vmatpush.msra.mxu0 0.0
    %150 = vmatpush.msra.mxu0 %v74
    %151 = vmatpush.msra.mxu0 %v72
    %152 = vmatpush.msra.mxu0 %v70
    %153 = vmatpush.msra.mxu0 %v68
    %154 = vmatmul.f32.gmra.mxu0 %v116
    %v155 = vpop.f32.mrf.mxu0
    %v156 = vadd.f32 %v111, %v155
    %157 = vdwg.mxu0
    %v158 = vmax.f32 %v136, 0.0
    %v159 = vmax.f32 %v156, 0.0
    %v161 = vperm.slane %v108, 0
    %163 = vmatpush.msra.mxu0 %v91
    %164 = vmatpush.msra.mxu0 %v90
    %165 = vmatpush.msra.mxu0 %v89
    %166 = vmatpush.msra.mxu0 %v88
    %167 = vmatpush.msra.mxu0 %v87
    %168 = vmatpush.msra.mxu0 %v86
    %169 = vmatpush.msra.mxu0 %v85
    %170 = vmatpush.msra.mxu0 %v84
    %171 = vmatpush.msra.mxu0 %v83
    %172 = vmatpush.msra.mxu0 %v82
    %173 = vmatpush.msra.mxu0 %v81
    %174 = vmatpush.msra.mxu0 %v80
    %175 = vmatpush.msra.mxu0 %v79
    %176 = vmatpush.msra.mxu0 %v78
    %177 = vmatpush.msra.mxu0 %v77
    %178 = vmatpush.msra.mxu0 %v76
    %179 = vmatmul.f32.gmra.mxu0 %v158
    %v180 = vpop.f32.mrf.mxu0
    %v181 = vadd.f32 %v161, %v180
    %182 = vdwg.mxu0
    %183 = vmatpush.msra.mxu0 %v107
    %184 = vmatpush.msra.mxu0 %v106
    %185 = vmatpush.msra.mxu0 %v105
    %186 = vmatpush.msra.mxu0 %v104
    %187 = vmatpush.msra.mxu0 %v103
    %188 = vmatpush.msra.mxu0 %v102
    %189 = vmatpush.msra.mxu0 %v101
    %190 = vmatpush.msra.mxu0 %v100
    %191 = vmatpush.msra.mxu0 %v99
    %192 = vmatpush.msra.mxu0 %v98
    %193 = vmatpush.msra.mxu0 %v97
    %194 = vmatpush.msra.mxu0 %v96
    %195 = vmatpush.msra.mxu0 %v95
    %196 = vmatpush.msra.mxu0 %v94
    %197 = vmatpush.msra.mxu0 %v93
    %198 = vmatpush.msra.mxu0 %v92
    %199 = vmatmul.f32.gmra.mxu0 %v159
    %v200 = vpop.f32.mrf.mxu0
    %v201 = vadd.f32 %v181, %v200
    %202 = vdwg.mxu0
    %vm203 = vcmp.gt.f32.partialorder %v201, 20.0
    %v204 = vmin.f32 %v201, 20.0
    %v205 = vmul.f32 %v204, 1.442695
    %v206 = vpow.pop %v205
    %v207 = vadd.f32 %v206, 1.0
    %v208 = vlog2.pop %v207
    %v209 = vmul.f32 %v208, 0.6931472
    %v210 = vmul.f32 -0.5, %v206
    %v211 = vadd.f32 %v210, 1.0
    %v212 = vmul.f32 %v211, %v206
    %v213 = vand.u32 2147483647, %v206
    %vm214 = vcmp.lt.f32.partialorder %v213, 0.0004427343
    %v215 = vsel %vm214, %v212, %v209
    %v216 = vsel %vm203, %v201, %v215
    %v217 = vld [vmem:[%s2] sm:$0xff]
    %v218 = vld [vmem:[%s7] sm:$0xff]
    %v219 = vld [vmem:[%s7 + $0x8] sm:$0xff]
    %v220 = vld [vmem:[%s7 + $0x10] sm:$0xff]
    %v221 = vld [vmem:[%s7 + $0x18] sm:$0xff]
    %v222 = vld [vmem:[%s7 + $0x20] sm:$0xff]
    %v223 = vld [vmem:[%s7 + $0x28] sm:$0xff]
    %v224 = vld [vmem:[%s7 + $0x30] sm:$0xff]
    %v225 = vld [vmem:[%s7 + $0x38] sm:$0xff]
    %v226 = vld [vmem:[%s8] sm:$0x3]
    %v227 = vld [vmem:[%s9] sm:$0xff]
    %v228 = vld [vmem:[%s9 + $0x8] sm:$0xff]
    %v229 = vld [vmem:[%s9 + $0x10] sm:$0xff]
    %v230 = vld [vmem:[%s9 + $0x18] sm:$0xff]
    %v231 = vld [vmem:[%s9 + $0x20] sm:$0xff]
    %v232 = vld [vmem:[%s9 + $0x28] sm:$0xff]
    %v233 = vld [vmem:[%s9 + $0x30] sm:$0xff]
    %v234 = vld [vmem:[%s9 + $0x38] sm:$0xff]
    %v235 = vld [vmem:[%s9 + $0x40] sm:$0xff]
    %v236 = vld [vmem:[%s9 + $0x48] sm:$0xff]
    %v237 = vld [vmem:[%s9 + $0x50] sm:$0xff]
    %v238 = vld [vmem:[%s9 + $0x58] sm:$0xff]
    %v239 = vld [vmem:[%s9 + $0x60] sm:$0xff]
    %v240 = vld [vmem:[%s9 + $0x68] sm:$0xff]
    %v241 = vld [vmem:[%s9 + $0x70] sm:$0xff]
    %v242 = vld [vmem:[%s9 + $0x78] sm:$0xff]
    %v243 = vld [vmem:[%s9 + $0x80] sm:$0xff]
    %v244 = vld [vmem:[%s9 + $0x88] sm:$0xff]
    %v245 = vld [vmem:[%s9 + $0x90] sm:$0xff]
    %v246 = vld [vmem:[%s9 + $0x98] sm:$0xff]
    %v247 = vld [vmem:[%s9 + $0xa0] sm:$0xff]
    %v248 = vld [vmem:[%s9 + $0xa8] sm:$0xff]
    %v249 = vld [vmem:[%s9 + $0xb0] sm:$0xff]
    %v250 = vld [vmem:[%s9 + $0xb8] sm:$0xff]
    %v251 = vld [vmem:[%s9 + $0xc0] sm:$0xff]
    %v252 = vld [vmem:[%s9 + $0xc8] sm:$0xff]
    %v253 = vld [vmem:[%s9 + $0xd0] sm:$0xff]
    %v254 = vld [vmem:[%s9 + $0xd8] sm:$0xff]
    %v255 = vld [vmem:[%s9 + $0xe0] sm:$0xff]
    %v256 = vld [vmem:[%s9 + $0xe8] sm:$0xff]
    %v257 = vld [vmem:[%s9 + $0xf0] sm:$0xff]
    %v258 = vld [vmem:[%s9 + $0xf8] sm:$0xff]
    %v259 = vld [vmem:[%s10] sm:$0x1]
    %v261 = vperm.slane %v226, 0
    %v262 = vperm.slane %v226, 1
    %v266 = vsel %vm114, %v217, 0
    %268 = vmatpush.msra.mxu0 0.0
    %269 = vmatpush.msra.mxu0 0.0
    %270 = vmatpush.msra.mxu0 0.0
    %271 = vmatpush.msra.mxu0 0.0
    %272 = vmatpush.msra.mxu0 0.0
    %273 = vmatpush.msra.mxu0 0.0
    %274 = vmatpush.msra.mxu0 0.0
    %275 = vmatpush.msra.mxu0 0.0
    %276 = vmatpush.msra.mxu0 0.0
    %277 = vmatpush.msra.mxu0 0.0
    %278 = vmatpush.msra.mxu0 0.0
    %279 = vmatpush.msra.mxu0 0.0
    %280 = vmatpush.msra.mxu0 %v224
    %281 = vmatpush.msra.mxu0 %v222
    %282 = vmatpush.msra.mxu0 %v220
    %283 = vmatpush.msra.mxu0 %v218
    %284 = vmatmul.f32.gmra.mxu0 %v266
    %v285 = vpop.f32.mrf.mxu0
    %v286 = vadd.f32 %v261, %v285
    %287 = vdwg.mxu0
    %288 = vmatpush.msra.mxu0 0.0
    %289 = vmatpush.msra.mxu0 0.0
    %290 = vmatpush.msra.mxu0 0.0
    %291 = vmatpush.msra.mxu0 0.0
    %292 = vmatpush.msra.mxu0 0.0
    %293 = vmatpush.msra.mxu0 0.0
    %294 = vmatpush.msra.mxu0 0.0
    %295 = vmatpush.msra.mxu0 0.0
    %296 = vmatpush.msra.mxu0 0.0
    %297 = vmatpush.msra.mxu0 0.0
    %298 = vmatpush.msra.mxu0 0.0
    %299 = vmatpush.msra.mxu0 0.0
    %300 = vmatpush.msra.mxu0 %v225
    %301 = vmatpush.msra.mxu0 %v223
    %302 = vmatpush.msra.mxu0 %v221
    %303 = vmatpush.msra.mxu0 %v219
    %304 = vmatmul.f32.gmra.mxu0 %v266
    %v305 = vpop.f32.mrf.mxu0
    %v306 = vadd.f32 %v262, %v305
    %307 = vdwg.mxu0
    %v308 = vmax.f32 %v286, 0.0
    %v309 = vmax.f32 %v306, 0.0
    %v311 = vperm.slane %v259, 0
    %313 = vmatpush.msra.mxu0 %v242
    %314 = vmatpush.msra.mxu0 %v241
    %315 = vmatpush.msra.mxu0 %v240
    %316 = vmatpush.msra.mxu0 %v239
    %317 = vmatpush.msra.mxu0 %v238
    %318 = vmatpush.msra.mxu0 %v237
    %319 = vmatpush.msra.mxu0 %v236
    %320 = vmatpush.msra.mxu0 %v235
    %321 = vmatpush.msra.mxu0 %v234
    %322 = vmatpush.msra.mxu0 %v233
    %323 = vmatpush.msra.mxu0 %v232
    %324 = vmatpush.msra.mxu0 %v231
    %325 = vmatpush.msra.mxu0 %v230
    %326 = vmatpush.msra.mxu0 %v229
    %327 = vmatpush.msra.mxu0 %v228
    %328 = vmatpush.msra.mxu0 %v227
    %329 = vmatmul.f32.gmra.mxu0 %v308
    %v330 = vpop.f32.mrf.mxu0
    %v331 = vadd.f32 %v311, %v330
    %332 = vdwg.mxu0
    %333 = vmatpush.msra.mxu0 %v258
    %334 = vmatpush.msra.mxu0 %v257
    %335 = vmatpush.msra.mxu0 %v256
    %336 = vmatpush.msra.mxu0 %v255
    %337 = vmatpush.msra.mxu0 %v254
    %338 = vmatpush.msra.mxu0 %v253
    %339 = vmatpush.msra.mxu0 %v252
    %340 = vmatpush.msra.mxu0 %v251
    %341 = vmatpush.msra.mxu0 %v250
    %342 = vmatpush.msra.mxu0 %v249
    %343 = vmatpush.msra.mxu0 %v248
    %344 = vmatpush.msra.mxu0 %v247
    %345 = vmatpush.msra.mxu0 %v246
    %346 = vmatpush.msra.mxu0 %v245
    %347 = vmatpush.msra.mxu0 %v244
    %348 = vmatpush.msra.mxu0 %v243
    %349 = vmatmul.f32.gmra.mxu0 %v309
    %v350 = vpop.f32.mrf.mxu0
    %v351 = vadd.f32 %v331, %v350
    %352 = vdwg.mxu0
    %vm353 = vcmp.gt.f32.partialorder %v351, 20.0
    %v354 = vmin.f32 %v351, 20.0
    %v355 = vmul.f32 %v354, 1.442695
    %v356 = vpow.pop %v355
    %v357 = vadd.f32 %v356, 1.0
    %v358 = vlog2.pop %v357
    %v359 = vmul.f32 %v358, 0.6931472
    %v360 = vmul.f32 -0.5, %v356
    %v361 = vadd.f32 %v360, 1.0
    %v362 = vmul.f32 %v361, %v356
    %v363 = vand.u32 2147483647, %v356
    %vm364 = vcmp.lt.f32.partialorder %v363, 0.0004427343
    %v365 = vsel %vm364, %v362, %v359
    %v366 = vsel %vm353, %v351, %v365
    %vm367 = vcmask 31744
    %368 = vst.msk [vmem:[%s17] sm:$0xff] %vm367, %v366
    %s369 = sld [smem:[#allocation2]]
    %371 = vrot.lane.b32.xlu0 %v216, 127
    %v372 = vpop.permute.xlu0 %371
    %v374 = vmul.f32 %v216, %v372
    %v375 = vmul.f32 %v366, %v216
    %377 = vrot.lane.b32.xlu0 %v374, 1
    %v378 = vpop.permute.xlu0 %377
    %v380 = vmul.f32 %v366, %v378
    %382 = vrot.lane.b32.xlu0 %v380, 127
    %v383 = vpop.permute.xlu0 %382
    %v385 = vsub.f32 %v375, %v383
    %386 = vrot.lane.b32.xlu0 %v374, 3
    %v387 = vpop.permute.xlu0 %386
    %v389 = vmul.f32 %v366, %v387
    %390 = vrot.lane.b32.xlu0 %v216, 1
    %v391 = vpop.permute.xlu0 %390
    %v393 = vmul.f32 %v366, %v391
    %395 = vrot.lane.b32.xlu0 %v393, 1
    %v396 = vpop.permute.xlu0 %395
    %v398 = vsub.f32 %v389, %v396
    %s399 = smul.f32 %s369, 0.33333334
    %v400 = vstv %s399
    %v401 = vmul.f32 %v400, %v385
    %v402 = vadd.f32 %v216, %v401
    %v403 = vmul.f32 %v400, %v398
    %405 = vrot.lane.b32.xlu0 %v403, 126
    %v406 = vpop.permute.xlu0 %405
    %v408 = vadd.f32 %v216, %v406
    %410 = vrot.lane.b32.xlu0 %v408, 127
    %v411 = vpop.permute.xlu0 %410
    %v413 = vmul.f32 %v402, %v411
    %v414 = vmul.f32 %v366, %v402
    %416 = vrot.lane.b32.xlu0 %v413, 1
    %v417 = vpop.permute.xlu0 %416
    %v419 = vmul.f32 %v366, %v417
    %421 = vrot.lane.b32.xlu0 %v419, 127
    %v422 = vpop.permute.xlu0 %421
    %v424 = vsub.f32 %v414, %v422
    %425 = vrot.lane.b32.xlu0 %v413, 3
    %v426 = vpop.permute.xlu0 %425
    %v428 = vmul.f32 %v366, %v426
    %429 = vrot.lane.b32.xlu0 %v408, 1
    %v430 = vpop.permute.xlu0 %429
    %v432 = vmul.f32 %v366, %v430
    %434 = vrot.lane.b32.xlu0 %v432, 1
    %v435 = vpop.permute.xlu0 %434
    %v437 = vsub.f32 %v428, %v435
    %v438 = vmul.f32 %v385, 0.33333334
    %v439 = vsub.f32 %v424, %v438
    %v440 = vstv %s369
    %v441 = vmul.f32 %v440, %v439
    %v442 = vadd.f32 %v216, %v441
    %v443 = vmul.f32 %v398, 0.33333334
    %v444 = vsub.f32 %v437, %v443
    %v445 = vmul.f32 %v440, %v444
    %447 = vrot.lane.b32.xlu0 %v445, 126
    %v448 = vpop.permute.xlu0 %447
    %v450 = vadd.f32 %v216, %v448
    %452 = vrot.lane.b32.xlu0 %v450, 127
    %v453 = vpop.permute.xlu0 %452
    %v455 = vmul.f32 %v442, %v453
    %v456 = vmul.f32 %v366, %v442
    %458 = vrot.lane.b32.xlu0 %v455, 1
    %v459 = vpop.permute.xlu0 %458
    %v461 = vmul.f32 %v366, %v459
    %463 = vrot.lane.b32.xlu0 %v461, 127
    %v464 = vpop.permute.xlu0 %463
    %v466 = vsub.f32 %v456, %v464
    %467 = vrot.lane.b32.xlu0 %v455, 3
    %v468 = vpop.permute.xlu0 %467
    %v470 = vmul.f32 %v366, %v468
    %471 = vrot.lane.b32.xlu0 %v450, 1
    %v472 = vpop.permute.xlu0 %471
    %v474 = vmul.f32 %v366, %v472
    %476 = vrot.lane.b32.xlu0 %v474, 1
    %v477 = vpop.permute.xlu0 %476
    %v479 = vsub.f32 %v470, %v477
    %v480 = vsub.f32 %v385, %v424
    %v481 = vadd.f32 %v480, %v466
    %v482 = vmul.f32 %v440, %v481
    %v483 = vadd.f32 %v216, %v482
    %v484 = vsub.f32 %v398, %v437
    %v485 = vadd.f32 %v484, %v479
    %v486 = vmul.f32 %v440, %v485
    %488 = vrot.lane.b32.xlu0 %v486, 126
    %v489 = vpop.permute.xlu0 %488
    %v491 = vadd.f32 %v216, %v489
    %493 = vrot.lane.b32.xlu0 %v491, 127
    %v494 = vpop.permute.xlu0 %493
    %v496 = vmul.f32 %v483, %v494
    %v497 = vmul.f32 %v366, %v483
    %499 = vrot.lane.b32.xlu0 %v496, 1
    %v500 = vpop.permute.xlu0 %499
    %v502 = vmul.f32 %v366, %v500
    %504 = vrot.lane.b32.xlu0 %v502, 127
    %v505 = vpop.permute.xlu0 %504
    %v507 = vsub.f32 %v497, %v505
    %508 = vrot.lane.b32.xlu0 %v496, 3
    %v509 = vpop.permute.xlu0 %508
    %v511 = vmul.f32 %v366, %v509
    %512 = vrot.lane.b32.xlu0 %v491, 1
    %v513 = vpop.permute.xlu0 %512
    %v515 = vmul.f32 %v366, %v513
    %517 = vrot.lane.b32.xlu0 %v515, 1
    %v518 = vpop.permute.xlu0 %517
    %v520 = vsub.f32 %v511, %v518
    %s521 = smul.f32 %s369, 0.125
    %v522 = vadd.f32 %v424, %v466
    %v523 = vmul.f32 %v522, 3.0
    %v524 = vadd.f32 %v385, %v523
    %v525 = vadd.f32 %v524, %v507
    %v526 = vstv %s521
    %v527 = vmul.f32 %v526, %v525
    %v528 = vadd.f32 %v216, %v527
    %v529 = vadd.f32 %v437, %v479
    %v530 = vmul.f32 %v529, 3.0
    %v531 = vadd.f32 %v398, %v530
    %v532 = vadd.f32 %v531, %v520
    %v533 = vmul.f32 %v526, %v532
    %535 = vrot.lane.b32.xlu0 %v533, 126
    %v536 = vpop.permute.xlu0 %535
    %v538 = vadd.f32 %v216, %v536
    %s539 = sld [smem:[#allocation2 + $0x1]]
    %541 = vrot.lane.b32.xlu0 %v538, 127
    %v542 = vpop.permute.xlu0 %541
    %v544 = vmul.f32 %v528, %v542
    %v545 = vmul.f32 %v366, %v528
    %547 = vrot.lane.b32.xlu0 %v544, 1
    %v548 = vpop.permute.xlu0 %547
    %v550 = vmul.f32 %v366, %v548
    %552 = vrot.lane.b32.xlu0 %v550, 127
    %v553 = vpop.permute.xlu0 %552
    %v555 = vsub.f32 %v545, %v553
    %556 = vrot.lane.b32.xlu0 %v544, 3
    %v557 = vpop.permute.xlu0 %556
    %v559 = vmul.f32 %v366, %v557
    %560 = vrot.lane.b32.xlu0 %v538, 1
    %v561 = vpop.permute.xlu0 %560
    %v563 = vmul.f32 %v366, %v561
    %565 = vrot.lane.b32.xlu0 %v563, 1
    %v566 = vpop.permute.xlu0 %565
    %v568 = vsub.f32 %v559, %v566
    %s569 = smul.f32 %s539, 0.33333334
    %v570 = vstv %s569
    %v571 = vmul.f32 %v570, %v555
    %v572 = vadd.f32 %v528, %v571
    %v573 = vmul.f32 %v570, %v568
    %575 = vrot.lane.b32.xlu0 %v573, 126
    %v576 = vpop.permute.xlu0 %575
    %v578 = vadd.f32 %v538, %v576
    %580 = vrot.lane.b32.xlu0 %v578, 127
    %v581 = vpop.permute.xlu0 %580
    %v583 = vmul.f32 %v572, %v581
    %v584 = vmul.f32 %v366, %v572
    %586 = vrot.lane.b32.xlu0 %v583, 1
    %v587 = vpop.permute.xlu0 %586
    %v589 = vmul.f32 %v366, %v587
    %591 = vrot.lane.b32.xlu0 %v589, 127
    %v592 = vpop.permute.xlu0 %591
    %v594 = vsub.f32 %v584, %v592
    %595 = vrot.lane.b32.xlu0 %v583, 3
    %v596 = vpop.permute.xlu0 %595
    %v598 = vmul.f32 %v366, %v596
    %599 = vrot.lane.b32.xlu0 %v578, 1
    %v600 = vpop.permute.xlu0 %599
    %v602 = vmul.f32 %v366, %v600
    %604 = vrot.lane.b32.xlu0 %v602, 1
    %v605 = vpop.permute.xlu0 %604
    %v607 = vsub.f32 %v598, %v605
    %v608 = vmul.f32 %v555, 0.33333334
    %v609 = vsub.f32 %v594, %v608
    %v610 = vstv %s539
    %v611 = vmul.f32 %v610, %v609
    %v612 = vadd.f32 %v528, %v611
    %v613 = vmul.f32 %v568, 0.33333334
    %v614 = vsub.f32 %v607, %v613
    %v615 = vmul.f32 %v610, %v614
    %617 = vrot.lane.b32.xlu0 %v615, 126
    %v618 = vpop.permute.xlu0 %617
    %v620 = vadd.f32 %v538, %v618
    %622 = vrot.lane.b32.xlu0 %v620, 127
    %v623 = vpop.permute.xlu0 %622
    %v625 = vmul.f32 %v612, %v623
    %v626 = vmul.f32 %v366, %v612
    %628 = vrot.lane.b32.xlu0 %v625, 1
    %v629 = vpop.permute.xlu0 %628
    %v631 = vmul.f32 %v366, %v629
    %633 = vrot.lane.b32.xlu0 %v631, 127
    %v634 = vpop.permute.xlu0 %633
    %v636 = vsub.f32 %v626, %v634
    %637 = vrot.lane.b32.xlu0 %v625, 3
    %v638 = vpop.permute.xlu0 %637
    %v640 = vmul.f32 %v366, %v638
    %641 = vrot.lane.b32.xlu0 %v620, 1
    %v642 = vpop.permute.xlu0 %641
    %v644 = vmul.f32 %v366, %v642
    %646 = vrot.lane.b32.xlu0 %v644, 1
    %v647 = vpop.permute.xlu0 %646
    %v649 = vsub.f32 %v640, %v647
    %v650 = vsub.f32 %v555, %v594
    %v651 = vadd.f32 %v650, %v636
    %v652 = vmul.f32 %v610, %v651
    %v653 = vadd.f32 %v528, %v652
    %v654 = vsub.f32 %v568, %v607
    %v655 = vadd.f32 %v654, %v649
    %v656 = vmul.f32 %v610, %v655
    %658 = vrot.lane.b32.xlu0 %v656, 126
    %v659 = vpop.permute.xlu0 %658
    %v661 = vadd.f32 %v538, %v659
    %663 = vrot.lane.b32.xlu0 %v661, 127
    %v664 = vpop.permute.xlu0 %663
    %v666 = vmul.f32 %v653, %v664
    %v667 = vmul.f32 %v366, %v653
    %669 = vrot.lane.b32.xlu0 %v666, 1
    %v670 = vpop.permute.xlu0 %669
    %v672 = vmul.f32 %v366, %v670
    %674 = vrot.lane.b32.xlu0 %v672, 127
    %v675 = vpop.permute.xlu0 %674
    %v677 = vsub.f32 %v667, %v675
    %678 = vrot.lane.b32.xlu0 %v666, 3
    %v679 = vpop.permute.xlu0 %678
    %v681 = vmul.f32 %v366, %v679
    %682 = vrot.lane.b32.xlu0 %v661, 1
    %v683 = vpop.permute.xlu0 %682
    %v685 = vmul.f32 %v366, %v683
    %687 = vrot.lane.b32.xlu0 %v685, 1
    %v688 = vpop.permute.xlu0 %687
    %v690 = vsub.f32 %v681, %v688
    %s691 = smul.f32 %s539, 0.125
    %v692 = vadd.f32 %v594, %v636
    %v693 = vmul.f32 %v692, 3.0
    %v694 = vadd.f32 %v555, %v693
    %v695 = vadd.f32 %v694, %v677
    %v696 = vstv %s691
    %v697 = vmul.f32 %v696, %v695
    %v698 = vadd.f32 %v528, %v697
    %v699 = vadd.f32 %v607, %v649
    %v700 = vmul.f32 %v699, 3.0
    %v701 = vadd.f32 %v568, %v700
    %v702 = vadd.f32 %v701, %v690
    %v703 = vmul.f32 %v696, %v702
    %705 = vrot.lane.b32.xlu0 %v703, 126
    %v706 = vpop.permute.xlu0 %705
    %v708 = vadd.f32 %v538, %v706
    %s709 = sld [smem:[#allocation2 + $0x2]]
    %711 = vrot.lane.b32.xlu0 %v708, 127
    %v712 = vpop.permute.xlu0 %711
    %v714 = vmul.f32 %v698, %v712
    %v715 = vmul.f32 %v366, %v698
    %717 = vrot.lane.b32.xlu0 %v714, 1
    %v718 = vpop.permute.xlu0 %717
    %v720 = vmul.f32 %v366, %v718
    %722 = vrot.lane.b32.xlu0 %v720, 127
    %v723 = vpop.permute.xlu0 %722
    %v725 = vsub.f32 %v715, %v723
    %726 = vrot.lane.b32.xlu0 %v714, 3
    %v727 = vpop.permute.xlu0 %726
    %v729 = vmul.f32 %v366, %v727
    %730 = vrot.lane.b32.xlu0 %v708, 1
    %v731 = vpop.permute.xlu0 %730
    %v733 = vmul.f32 %v366, %v731
    %735 = vrot.lane.b32.xlu0 %v733, 1
    %v736 = vpop.permute.xlu0 %735
    %v738 = vsub.f32 %v729, %v736
    %s739 = smul.f32 %s709, 0.33333334
    %v740 = vstv %s739
    %v741 = vmul.f32 %v740, %v725
    %v742 = vadd.f32 %v698, %v741
    %v743 = vmul.f32 %v740, %v738
    %745 = vrot.lane.b32.xlu0 %v743, 126
    %v746 = vpop.permute.xlu0 %745
    %v748 = vadd.f32 %v708, %v746
    %750 = vrot.lane.b32.xlu0 %v748, 127
    %v751 = vpop.permute.xlu0 %750
    %v753 = vmul.f32 %v742, %v751
    %v754 = vmul.f32 %v366, %v742
    %756 = vrot.lane.b32.xlu0 %v753, 1
    %v757 = vpop.permute.xlu0 %756
    %v759 = vmul.f32 %v366, %v757
    %761 = vrot.lane.b32.xlu0 %v759, 127
    %v762 = vpop.permute.xlu0 %761
    %v764 = vsub.f32 %v754, %v762
    %765 = vrot.lane.b32.xlu0 %v753, 3
    %v766 = vpop.permute.xlu0 %765
    %v768 = vmul.f32 %v366, %v766
    %769 = vrot.lane.b32.xlu0 %v748, 1
    %v770 = vpop.permute.xlu0 %769
    %v772 = vmul.f32 %v366, %v770
    %774 = vrot.lane.b32.xlu0 %v772, 1
    %v775 = vpop.permute.xlu0 %774
    %v777 = vsub.f32 %v768, %v775
    %v778 = vmul.f32 %v725, 0.33333334
    %v779 = vsub.f32 %v764, %v778
    %v780 = vstv %s709
    %v781 = vmul.f32 %v780, %v779
    %v782 = vadd.f32 %v698, %v781
    %v783 = vmul.f32 %v738, 0.33333334
    %v784 = vsub.f32 %v777, %v783
    %v785 = vmul.f32 %v780, %v784
    %787 = vrot.lane.b32.xlu0 %v785, 126
    %v788 = vpop.permute.xlu0 %787
    %v790 = vadd.f32 %v708, %v788
    %792 = vrot.lane.b32.xlu0 %v790, 127
    %v793 = vpop.permute.xlu0 %792
    %v795 = vmul.f32 %v782, %v793
    %v796 = vmul.f32 %v366, %v782
    %798 = vrot.lane.b32.xlu0 %v795, 1
    %v799 = vpop.permute.xlu0 %798
    %v801 = vmul.f32 %v366, %v799
    %803 = vrot.lane.b32.xlu0 %v801, 127
    %v804 = vpop.permute.xlu0 %803
    %v806 = vsub.f32 %v796, %v804
    %807 = vrot.lane.b32.xlu0 %v795, 3
    %v808 = vpop.permute.xlu0 %807
    %v810 = vmul.f32 %v366, %v808
    %811 = vrot.lane.b32.xlu0 %v790, 1
    %v812 = vpop.permute.xlu0 %811
    %v814 = vmul.f32 %v366, %v812
    %816 = vrot.lane.b32.xlu0 %v814, 1
    %v817 = vpop.permute.xlu0 %816
    %v819 = vsub.f32 %v810, %v817
    %v820 = vsub.f32 %v725, %v764
    %v821 = vadd.f32 %v820, %v806
    %v822 = vmul.f32 %v780, %v821
    %v823 = vadd.f32 %v698, %v822
    %v824 = vsub.f32 %v738, %v777
    %v825 = vadd.f32 %v824, %v819
    %v826 = vmul.f32 %v780, %v825
    %828 = vrot.lane.b32.xlu0 %v826, 126
    %v829 = vpop.permute.xlu0 %828
    %v831 = vadd.f32 %v708, %v829
    %833 = vrot.lane.b32.xlu0 %v831, 127
    %v834 = vpop.permute.xlu0 %833
    %v836 = vmul.f32 %v823, %v834
    %v837 = vmul.f32 %v366, %v823
    %839 = vrot.lane.b32.xlu0 %v836, 1
    %v840 = vpop.permute.xlu0 %839
    %v842 = vmul.f32 %v366, %v840
    %844 = vrot.lane.b32.xlu0 %v842, 127
    %v845 = vpop.permute.xlu0 %844
    %v847 = vsub.f32 %v837, %v845
    %848 = vrot.lane.b32.xlu0 %v836, 3
    %v849 = vpop.permute.xlu0 %848
    %v851 = vmul.f32 %v366, %v849
    %852 = vrot.lane.b32.xlu0 %v831, 1
    %v853 = vpop.permute.xlu0 %852
    %v855 = vmul.f32 %v366, %v853
    %857 = vrot.lane.b32.xlu0 %v855, 1
    %v858 = vpop.permute.xlu0 %857
    %v860 = vsub.f32 %v851, %v858
    %s861 = smul.f32 %s709, 0.125
    %v862 = vadd.f32 %v764, %v806
    %v863 = vmul.f32 %v862, 3.0
    %v864 = vadd.f32 %v725, %v863
    %v865 = vadd.f32 %v864, %v847
    %v866 = vstv %s861
    %v867 = vmul.f32 %v866, %v865
    %v868 = vadd.f32 %v698, %v867
    %v869 = vadd.f32 %v777, %v819
    %v870 = vmul.f32 %v869, 3.0
    %v871 = vadd.f32 %v738, %v870
    %v872 = vadd.f32 %v871, %v860
    %v873 = vmul.f32 %v866, %v872
    %875 = vrot.lane.b32.xlu0 %v873, 126
    %v876 = vpop.permute.xlu0 %875
    %v878 = vadd.f32 %v708, %v876
    %s879 = sld [smem:[#allocation2 + $0x3]]
    %881 = vrot.lane.b32.xlu0 %v878, 127
    %v882 = vpop.permute.xlu0 %881
    %v884 = vmul.f32 %v868, %v882
    %v885 = vmul.f32 %v366, %v868
    %887 = vrot.lane.b32.xlu0 %v884, 1
    %v888 = vpop.permute.xlu0 %887
    %v890 = vmul.f32 %v366, %v888
    %892 = vrot.lane.b32.xlu0 %v890, 127
    %v893 = vpop.permute.xlu0 %892
    %v895 = vsub.f32 %v885, %v893
    %896 = vrot.lane.b32.xlu0 %v884, 3
    %v897 = vpop.permute.xlu0 %896
    %v899 = vmul.f32 %v366, %v897
    %900 = vrot.lane.b32.xlu0 %v878, 1
    %v901 = vpop.permute.xlu0 %900
    %v903 = vmul.f32 %v366, %v901
    %905 = vrot.lane.b32.xlu0 %v903, 1
    %v906 = vpop.permute.xlu0 %905
    %v908 = vsub.f32 %v899, %v906
    %s909 = smul.f32 %s879, 0.33333334
    %v910 = vstv %s909
    %v911 = vmul.f32 %v910, %v895
    %v912 = vadd.f32 %v868, %v911
    %v913 = vmul.f32 %v910, %v908
    %915 = vrot.lane.b32.xlu0 %v913, 126
    %v916 = vpop.permute.xlu0 %915
    %v918 = vadd.f32 %v878, %v916
    %920 = vrot.lane.b32.xlu0 %v918, 127
    %v921 = vpop.permute.xlu0 %920
    %v923 = vmul.f32 %v912, %v921
    %v924 = vmul.f32 %v366, %v912
    %926 = vrot.lane.b32.xlu0 %v923, 1
    %v927 = vpop.permute.xlu0 %926
    %v929 = vmul.f32 %v366, %v927
    %931 = vrot.lane.b32.xlu0 %v929, 127
    %v932 = vpop.permute.xlu0 %931
    %v934 = vsub.f32 %v924, %v932
    %935 = vrot.lane.b32.xlu0 %v923, 3
    %v936 = vpop.permute.xlu0 %935
    %v938 = vmul.f32 %v366, %v936
    %939 = vrot.lane.b32.xlu0 %v918, 1
    %v940 = vpop.permute.xlu0 %939
    %v942 = vmul.f32 %v366, %v940
    %944 = vrot.lane.b32.xlu0 %v942, 1
    %v945 = vpop.permute.xlu0 %944
    %v947 = vsub.f32 %v938, %v945
    %v948 = vmul.f32 %v895, 0.33333334
    %v949 = vsub.f32 %v934, %v948
    %v950 = vstv %s879
    %v951 = vmul.f32 %v950, %v949
    %v952 = vadd.f32 %v868, %v951
    %v953 = vmul.f32 %v908, 0.33333334
    %v954 = vsub.f32 %v947, %v953
    %v955 = vmul.f32 %v950, %v954
    %957 = vrot.lane.b32.xlu0 %v955, 126
    %v958 = vpop.permute.xlu0 %957
    %v960 = vadd.f32 %v878, %v958
    %962 = vrot.lane.b32.xlu0 %v960, 127
    %v963 = vpop.permute.xlu0 %962
    %v965 = vmul.f32 %v952, %v963
    %v966 = vmul.f32 %v366, %v952
    %968 = vrot.lane.b32.xlu0 %v965, 1
    %v969 = vpop.permute.xlu0 %968
    %v971 = vmul.f32 %v366, %v969
    %973 = vrot.lane.b32.xlu0 %v971, 127
    %v974 = vpop.permute.xlu0 %973
    %v976 = vsub.f32 %v966, %v974
    %977 = vrot.lane.b32.xlu0 %v965, 3
    %v978 = vpop.permute.xlu0 %977
    %v980 = vmul.f32 %v366, %v978
    %981 = vrot.lane.b32.xlu0 %v960, 1
    %v982 = vpop.permute.xlu0 %981
    %v984 = vmul.f32 %v366, %v982
    %986 = vrot.lane.b32.xlu0 %v984, 1
    %v987 = vpop.permute.xlu0 %986
    %v989 = vsub.f32 %v980, %v987
    %v990 = vsub.f32 %v895, %v934
    %v991 = vadd.f32 %v990, %v976
    %v992 = vmul.f32 %v950, %v991
    %v993 = vadd.f32 %v868, %v992
    %v994 = vsub.f32 %v908, %v947
    %v995 = vadd.f32 %v994, %v989
    %v996 = vmul.f32 %v950, %v995
    %998 = vrot.lane.b32.xlu0 %v996, 126
    %v999 = vpop.permute.xlu0 %998
    %v1001 = vadd.f32 %v878, %v999
    %1003 = vrot.lane.b32.xlu0 %v1001, 127
    %v1004 = vpop.permute.xlu0 %1003
    %v1006 = vmul.f32 %v993, %v1004
    %v1007 = vmul.f32 %v366, %v993
    %1009 = vrot.lane.b32.xlu0 %v1006, 1
    %v1010 = vpop.permute.xlu0 %1009
    %v1012 = vmul.f32 %v366, %v1010
    %1014 = vrot.lane.b32.xlu0 %v1012, 127
    %v1015 = vpop.permute.xlu0 %1014
    %v1017 = vsub.f32 %v1007, %v1015
    %1018 = vrot.lane.b32.xlu0 %v1006, 3
    %v1019 = vpop.permute.xlu0 %1018
    %v1021 = vmul.f32 %v366, %v1019
    %1022 = vrot.lane.b32.xlu0 %v1001, 1
    %v1023 = vpop.permute.xlu0 %1022
    %v1025 = vmul.f32 %v366, %v1023
    %1027 = vrot.lane.b32.xlu0 %v1025, 1
    %v1028 = vpop.permute.xlu0 %1027
    %v1030 = vsub.f32 %v1021, %v1028
    %s1031 = smul.f32 %s879, 0.125
    %v1032 = vadd.f32 %v934, %v976
    %v1033 = vmul.f32 %v1032, 3.0
    %v1034 = vadd.f32 %v895, %v1033
    %v1035 = vadd.f32 %v1034, %v1017
    %v1036 = vstv %s1031
    %v1037 = vmul.f32 %v1036, %v1035
    %v1038 = vadd.f32 %v868, %v1037
    %v1039 = vadd.f32 %v947, %v989
    %v1040 = vmul.f32 %v1039, 3.0
    %v1041 = vadd.f32 %v908, %v1040
    %v1042 = vadd.f32 %v1041, %v1030
    %v1043 = vmul.f32 %v1036, %v1042
    %1045 = vrot.lane.b32.xlu0 %v1043, 126
    %v1046 = vpop.permute.xlu0 %1045
    %v1048 = vadd.f32 %v878, %v1046
    %s1049 = sld [smem:[#allocation2 + $0x4]]
    %1051 = vrot.lane.b32.xlu0 %v1048, 127
    %v1052 = vpop.permute.xlu0 %1051
    %v1054 = vmul.f32 %v1038, %v1052
    %v1055 = vmul.f32 %v366, %v1038
    %1057 = vrot.lane.b32.xlu0 %v1054, 1
    %v1058 = vpop.permute.xlu0 %1057
    %v1060 = vmul.f32 %v366, %v1058
    %1062 = vrot.lane.b32.xlu0 %v1060, 127
    %v1063 = vpop.permute.xlu0 %1062
    %v1065 = vsub.f32 %v1055, %v1063
    %1066 = vrot.lane.b32.xlu0 %v1054, 3
    %v1067 = vpop.permute.xlu0 %1066
    %v1069 = vmul.f32 %v366, %v1067
    %1070 = vrot.lane.b32.xlu0 %v1048, 1
    %v1071 = vpop.permute.xlu0 %1070
    %v1073 = vmul.f32 %v366, %v1071
    %1075 = vrot.lane.b32.xlu0 %v1073, 1
    %v1076 = vpop.permute.xlu0 %1075
    %v1078 = vsub.f32 %v1069, %v1076
    %s1079 = smul.f32 %s1049, 0.33333334
    %v1080 = vstv %s1079
    %v1081 = vmul.f32 %v1080, %v1065
    %v1082 = vadd.f32 %v1038, %v1081
    %v1083 = vmul.f32 %v1080, %v1078
    %1085 = vrot.lane.b32.xlu0 %v1083, 126
    %v1086 = vpop.permute.xlu0 %1085
    %v1088 = vadd.f32 %v1048, %v1086
    %1090 = vrot.lane.b32.xlu0 %v1088, 127
    %v1091 = vpop.permute.xlu0 %1090
    %v1093 = vmul.f32 %v1082, %v1091
    %v1094 = vmul.f32 %v366, %v1082
    %1096 = vrot.lane.b32.xlu0 %v1093, 1
    %v1097 = vpop.permute.xlu0 %1096
    %v1099 = vmul.f32 %v366, %v1097
    %1101 = vrot.lane.b32.xlu0 %v1099, 127
    %v1102 = vpop.permute.xlu0 %1101
    %v1104 = vsub.f32 %v1094, %v1102
    %1105 = vrot.lane.b32.xlu0 %v1093, 3
    %v1106 = vpop.permute.xlu0 %1105
    %v1108 = vmul.f32 %v366, %v1106
    %1109 = vrot.lane.b32.xlu0 %v1088, 1
    %v1110 = vpop.permute.xlu0 %1109
    %v1112 = vmul.f32 %v366, %v1110
    %1114 = vrot.lane.b32.xlu0 %v1112, 1
    %v1115 = vpop.permute.xlu0 %1114
    %v1117 = vsub.f32 %v1108, %v1115
    %v1118 = vmul.f32 %v1065, 0.33333334
    %v1119 = vsub.f32 %v1104, %v1118
    %v1120 = vstv %s1049
    %v1121 = vmul.f32 %v1120, %v1119
    %v1122 = vadd.f32 %v1038, %v1121
    %v1123 = vmul.f32 %v1078, 0.33333334
    %v1124 = vsub.f32 %v1117, %v1123
    %v1125 = vmul.f32 %v1120, %v1124
    %1127 = vrot.lane.b32.xlu0 %v1125, 126
    %v1128 = vpop.permute.xlu0 %1127
    %v1130 = vadd.f32 %v1048, %v1128
    %1132 = vrot.lane.b32.xlu0 %v1130, 127
    %v1133 = vpop.permute.xlu0 %1132
    %v1135 = vmul.f32 %v1122, %v1133
    %v1136 = vmul.f32 %v366, %v1122
    %1138 = vrot.lane.b32.xlu0 %v1135, 1
    %v1139 = vpop.permute.xlu0 %1138
    %v1141 = vmul.f32 %v366, %v1139
    %1143 = vrot.lane.b32.xlu0 %v1141, 127
    %v1144 = vpop.permute.xlu0 %1143
    %v1146 = vsub.f32 %v1136, %v1144
    %1147 = vrot.lane.b32.xlu0 %v1135, 3
    %v1148 = vpop.permute.xlu0 %1147
    %v1150 = vmul.f32 %v366, %v1148
    %1151 = vrot.lane.b32.xlu0 %v1130, 1
    %v1152 = vpop.permute.xlu0 %1151
    %v1154 = vmul.f32 %v366, %v1152
    %1156 = vrot.lane.b32.xlu0 %v1154, 1
    %v1157 = vpop.permute.xlu0 %1156
    %v1159 = vsub.f32 %v1150, %v1157
    %v1160 = vsub.f32 %v1065, %v1104
    %v1161 = vadd.f32 %v1160, %v1146
    %v1162 = vmul.f32 %v1120, %v1161
    %v1163 = vadd.f32 %v1038, %v1162
    %v1164 = vsub.f32 %v1078, %v1117
    %v1165 = vadd.f32 %v1164, %v1159
    %v1166 = vmul.f32 %v1120, %v1165
    %1168 = vrot.lane.b32.xlu0 %v1166, 126
    %v1169 = vpop.permute.xlu0 %1168
    %v1171 = vadd.f32 %v1048, %v1169
    %1173 = vrot.lane.b32.xlu0 %v1171, 127
    %v1174 = vpop.permute.xlu0 %1173
    %v1176 = vmul.f32 %v1163, %v1174
    %v1177 = vmul.f32 %v366, %v1163
    %1179 = vrot.lane.b32.xlu0 %v1176, 1
    %v1180 = vpop.permute.xlu0 %1179
    %v1182 = vmul.f32 %v366, %v1180
    %1184 = vrot.lane.b32.xlu0 %v1182, 127
    %v1185 = vpop.permute.xlu0 %1184
    %v1187 = vsub.f32 %v1177, %v1185
    %1188 = vrot.lane.b32.xlu0 %v1176, 3
    %v1189 = vpop.permute.xlu0 %1188
    %v1191 = vmul.f32 %v366, %v1189
    %1192 = vrot.lane.b32.xlu0 %v1171, 1
    %v1193 = vpop.permute.xlu0 %1192
    %v1195 = vmul.f32 %v366, %v1193
    %1197 = vrot.lane.b32.xlu0 %v1195, 1
    %v1198 = vpop.permute.xlu0 %1197
    %v1200 = vsub.f32 %v1191, %v1198
    %s1201 = smul.f32 %s1049, 0.125
    %v1202 = vadd.f32 %v1104, %v1146
    %v1203 = vmul.f32 %v1202, 3.0
    %v1204 = vadd.f32 %v1065, %v1203
    %v1205 = vadd.f32 %v1204, %v1187
    %v1206 = vstv %s1201
    %v1207 = vmul.f32 %v1206, %v1205
    %v1208 = vadd.f32 %v1038, %v1207
    %v1209 = vadd.f32 %v1117, %v1159
    %v1210 = vmul.f32 %v1209, 3.0
    %v1211 = vadd.f32 %v1078, %v1210
    %v1212 = vadd.f32 %v1211, %v1200
    %v1213 = vmul.f32 %v1206, %v1212
    %1215 = vrot.lane.b32.xlu0 %v1213, 126
    %v1216 = vpop.permute.xlu0 %1215
    %v1218 = vadd.f32 %v1048, %v1216
    %s1219 = sld [smem:[#allocation2 + $0x5]]
    %1221 = vrot.lane.b32.xlu0 %v1218, 127
    %v1222 = vpop.permute.xlu0 %1221
    %v1224 = vmul.f32 %v1208, %v1222
    %v1225 = vmul.f32 %v366, %v1208
    %1227 = vrot.lane.b32.xlu0 %v1224, 1
    %v1228 = vpop.permute.xlu0 %1227
    %v1230 = vmul.f32 %v366, %v1228
    %1232 = vrot.lane.b32.xlu0 %v1230, 127
    %v1233 = vpop.permute.xlu0 %1232
    %v1235 = vsub.f32 %v1225, %v1233
    %1236 = vrot.lane.b32.xlu0 %v1224, 3
    %v1237 = vpop.permute.xlu0 %1236
    %v1239 = vmul.f32 %v366, %v1237
    %1240 = vrot.lane.b32.xlu0 %v1218, 1
    %v1241 = vpop.permute.xlu0 %1240
    %v1243 = vmul.f32 %v366, %v1241
    %1245 = vrot.lane.b32.xlu0 %v1243, 1
    %v1246 = vpop.permute.xlu0 %1245
    %v1248 = vsub.f32 %v1239, %v1246
    %s1249 = smul.f32 %s1219, 0.33333334
    %v1250 = vstv %s1249
    %v1251 = vmul.f32 %v1250, %v1235
    %v1252 = vadd.f32 %v1208, %v1251
    %v1253 = vmul.f32 %v1250, %v1248
    %1255 = vrot.lane.b32.xlu0 %v1253, 126
    %v1256 = vpop.permute.xlu0 %1255
    %v1258 = vadd.f32 %v1218, %v1256
    %1260 = vrot.lane.b32.xlu0 %v1258, 127
    %v1261 = vpop.permute.xlu0 %1260
    %v1263 = vmul.f32 %v1252, %v1261
    %v1264 = vmul.f32 %v366, %v1252
    %1266 = vrot.lane.b32.xlu0 %v1263, 1
    %v1267 = vpop.permute.xlu0 %1266
    %v1269 = vmul.f32 %v366, %v1267
    %1271 = vrot.lane.b32.xlu0 %v1269, 127
    %v1272 = vpop.permute.xlu0 %1271
    %v1274 = vsub.f32 %v1264, %v1272
    %1275 = vrot.lane.b32.xlu0 %v1263, 3
    %v1276 = vpop.permute.xlu0 %1275
    %v1278 = vmul.f32 %v366, %v1276
    %1279 = vrot.lane.b32.xlu0 %v1258, 1
    %v1280 = vpop.permute.xlu0 %1279
    %v1282 = vmul.f32 %v366, %v1280
    %1284 = vrot.lane.b32.xlu0 %v1282, 1
    %v1285 = vpop.permute.xlu0 %1284
    %v1287 = vsub.f32 %v1278, %v1285
    %v1288 = vmul.f32 %v1235, 0.33333334
    %v1289 = vsub.f32 %v1274, %v1288
    %v1290 = vstv %s1219
    %v1291 = vmul.f32 %v1290, %v1289
    %v1292 = vadd.f32 %v1208, %v1291
    %v1293 = vmul.f32 %v1248, 0.33333334
    %v1294 = vsub.f32 %v1287, %v1293
    %v1295 = vmul.f32 %v1290, %v1294
    %1297 = vrot.lane.b32.xlu0 %v1295, 126
    %v1298 = vpop.permute.xlu0 %1297
    %v1300 = vadd.f32 %v1218, %v1298
    %1302 = vrot.lane.b32.xlu0 %v1300, 127
    %v1303 = vpop.permute.xlu0 %1302
    %v1305 = vmul.f32 %v1292, %v1303
    %v1306 = vmul.f32 %v366, %v1292
    %1308 = vrot.lane.b32.xlu0 %v1305, 1
    %v1309 = vpop.permute.xlu0 %1308
    %v1311 = vmul.f32 %v366, %v1309
    %1313 = vrot.lane.b32.xlu0 %v1311, 127
    %v1314 = vpop.permute.xlu0 %1313
    %v1316 = vsub.f32 %v1306, %v1314
    %1317 = vrot.lane.b32.xlu0 %v1305, 3
    %v1318 = vpop.permute.xlu0 %1317
    %v1320 = vmul.f32 %v366, %v1318
    %1321 = vrot.lane.b32.xlu0 %v1300, 1
    %v1322 = vpop.permute.xlu0 %1321
    %v1324 = vmul.f32 %v366, %v1322
    %1326 = vrot.lane.b32.xlu0 %v1324, 1
    %v1327 = vpop.permute.xlu0 %1326
    %v1329 = vsub.f32 %v1320, %v1327
    %v1330 = vsub.f32 %v1235, %v1274
    %v1331 = vadd.f32 %v1330, %v1316
    %v1332 = vmul.f32 %v1290, %v1331
    %v1333 = vadd.f32 %v1208, %v1332
    %v1334 = vsub.f32 %v1248, %v1287
    %v1335 = vadd.f32 %v1334, %v1329
    %v1336 = vmul.f32 %v1290, %v1335
    %1338 = vrot.lane.b32.xlu0 %v1336, 126
    %v1339 = vpop.permute.xlu0 %1338
    %v1341 = vadd.f32 %v1218, %v1339
    %1343 = vrot.lane.b32.xlu0 %v1341, 127
    %v1344 = vpop.permute.xlu0 %1343
    %v1346 = vmul.f32 %v1333, %v1344
    %v1347 = vmul.f32 %v366, %v1333
    %1349 = vrot.lane.b32.xlu0 %v1346, 1
    %v1350 = vpop.permute.xlu0 %1349
    %v1352 = vmul.f32 %v366, %v1350
    %1354 = vrot.lane.b32.xlu0 %v1352, 127
    %v1355 = vpop.permute.xlu0 %1354
    %v1357 = vsub.f32 %v1347, %v1355
    %1358 = vrot.lane.b32.xlu0 %v1346, 3
    %v1359 = vpop.permute.xlu0 %1358
    %v1361 = vmul.f32 %v366, %v1359
    %1362 = vrot.lane.b32.xlu0 %v1341, 1
    %v1363 = vpop.permute.xlu0 %1362
    %v1365 = vmul.f32 %v366, %v1363
    %1367 = vrot.lane.b32.xlu0 %v1365, 1
    %v1368 = vpop.permute.xlu0 %1367
    %v1370 = vsub.f32 %v1361, %v1368
    %s1371 = smul.f32 %s1219, 0.125
    %v1372 = vadd.f32 %v1274, %v1316
    %v1373 = vmul.f32 %v1372, 3.0
    %v1374 = vadd.f32 %v1235, %v1373
    %v1375 = vadd.f32 %v1374, %v1357
    %v1376 = vstv %s1371
    %v1377 = vmul.f32 %v1376, %v1375
    %v1378 = vadd.f32 %v1208, %v1377
    %v1379 = vadd.f32 %v1287, %v1329
    %v1380 = vmul.f32 %v1379, 3.0
    %v1381 = vadd.f32 %v1248, %v1380
    %v1382 = vadd.f32 %v1381, %v1370
    %v1383 = vmul.f32 %v1376, %v1382
    %1385 = vrot.lane.b32.xlu0 %v1383, 126
    %v1386 = vpop.permute.xlu0 %1385
    %v1388 = vadd.f32 %v1218, %v1386
    %s1389 = sld [smem:[#allocation2 + $0x6]]
    %1391 = vrot.lane.b32.xlu0 %v1388, 127
    %v1392 = vpop.permute.xlu0 %1391
    %v1394 = vmul.f32 %v1378, %v1392
    %v1395 = vmul.f32 %v366, %v1378
    %1397 = vrot.lane.b32.xlu0 %v1394, 1
    %v1398 = vpop.permute.xlu0 %1397
    %v1400 = vmul.f32 %v366, %v1398
    %1402 = vrot.lane.b32.xlu0 %v1400, 127
    %v1403 = vpop.permute.xlu0 %1402
    %v1405 = vsub.f32 %v1395, %v1403
    %1406 = vrot.lane.b32.xlu0 %v1394, 3
    %v1407 = vpop.permute.xlu0 %1406
    %v1409 = vmul.f32 %v366, %v1407
    %1410 = vrot.lane.b32.xlu0 %v1388, 1
    %v1411 = vpop.permute.xlu0 %1410
    %v1413 = vmul.f32 %v366, %v1411
    %1415 = vrot.lane.b32.xlu0 %v1413, 1
    %v1416 = vpop.permute.xlu0 %1415
    %v1418 = vsub.f32 %v1409, %v1416
    %s1419 = smul.f32 %s1389, 0.33333334
    %v1420 = vstv %s1419
    %v1421 = vmul.f32 %v1420, %v1405
    %v1422 = vadd.f32 %v1378, %v1421
    %v1423 = vmul.f32 %v1420, %v1418
    %1425 = vrot.lane.b32.xlu0 %v1423, 126
    %v1426 = vpop.permute.xlu0 %1425
    %v1428 = vadd.f32 %v1388, %v1426
    %1430 = vrot.lane.b32.xlu0 %v1428, 127
    %v1431 = vpop.permute.xlu0 %1430
    %v1433 = vmul.f32 %v1422, %v1431
    %v1434 = vmul.f32 %v366, %v1422
    %1436 = vrot.lane.b32.xlu0 %v1433, 1
    %v1437 = vpop.permute.xlu0 %1436
    %v1439 = vmul.f32 %v366, %v1437
    %1441 = vrot.lane.b32.xlu0 %v1439, 127
    %v1442 = vpop.permute.xlu0 %1441
    %v1444 = vsub.f32 %v1434, %v1442
    %1445 = vrot.lane.b32.xlu0 %v1433, 3
    %v1446 = vpop.permute.xlu0 %1445
    %v1448 = vmul.f32 %v366, %v1446
    %1449 = vrot.lane.b32.xlu0 %v1428, 1
    %v1450 = vpop.permute.xlu0 %1449
    %v1452 = vmul.f32 %v366, %v1450
    %1454 = vrot.lane.b32.xlu0 %v1452, 1
    %v1455 = vpop.permute.xlu0 %1454
    %v1457 = vsub.f32 %v1448, %v1455
    %v1458 = vmul.f32 %v1405, 0.33333334
    %v1459 = vsub.f32 %v1444, %v1458
    %v1460 = vstv %s1389
    %v1461 = vmul.f32 %v1460, %v1459
    %v1462 = vadd.f32 %v1378, %v1461
    %v1463 = vmul.f32 %v1418, 0.33333334
    %v1464 = vsub.f32 %v1457, %v1463
    %v1465 = vmul.f32 %v1460, %v1464
    %1467 = vrot.lane.b32.xlu0 %v1465, 126
    %v1468 = vpop.permute.xlu0 %1467
    %v1470 = vadd.f32 %v1388, %v1468
    %1472 = vrot.lane.b32.xlu0 %v1470, 127
    %v1473 = vpop.permute.xlu0 %1472
    %v1475 = vmul.f32 %v1462, %v1473
    %v1476 = vmul.f32 %v366, %v1462
    %1478 = vrot.lane.b32.xlu0 %v1475, 1
    %v1479 = vpop.permute.xlu0 %1478
    %v1481 = vmul.f32 %v366, %v1479
    %1483 = vrot.lane.b32.xlu0 %v1481, 127
    %v1484 = vpop.permute.xlu0 %1483
    %v1486 = vsub.f32 %v1476, %v1484
    %1487 = vrot.lane.b32.xlu0 %v1475, 3
    %v1488 = vpop.permute.xlu0 %1487
    %v1490 = vmul.f32 %v366, %v1488
    %1491 = vrot.lane.b32.xlu0 %v1470, 1
    %v1492 = vpop.permute.xlu0 %1491
    %v1494 = vmul.f32 %v366, %v1492
    %1496 = vrot.lane.b32.xlu0 %v1494, 1
    %v1497 = vpop.permute.xlu0 %1496
    %v1499 = vsub.f32 %v1490, %v1497
    %v1500 = vsub.f32 %v1405, %v1444
    %v1501 = vadd.f32 %v1500, %v1486
    %v1502 = vmul.f32 %v1460, %v1501
    %v1503 = vadd.f32 %v1378, %v1502
    %v1504 = vsub.f32 %v1418, %v1457
    %v1505 = vadd.f32 %v1504, %v1499
    %v1506 = vmul.f32 %v1460, %v1505
    %1508 = vrot.lane.b32.xlu0 %v1506, 126
    %v1509 = vpop.permute.xlu0 %1508
    %v1511 = vadd.f32 %v1388, %v1509
    %1513 = vrot.lane.b32.xlu0 %v1511, 127
    %v1514 = vpop.permute.xlu0 %1513
    %v1516 = vmul.f32 %v1503, %v1514
    %v1517 = vmul.f32 %v366, %v1503
    %1519 = vrot.lane.b32.xlu0 %v1516, 1
    %v1520 = vpop.permute.xlu0 %1519
    %v1522 = vmul.f32 %v366, %v1520
    %1524 = vrot.lane.b32.xlu0 %v1522, 127
    %v1525 = vpop.permute.xlu0 %1524
    %v1527 = vsub.f32 %v1517, %v1525
    %1528 = vrot.lane.b32.xlu0 %v1516, 3
    %v1529 = vpop.permute.xlu0 %1528
    %v1531 = vmul.f32 %v366, %v1529
    %1532 = vrot.lane.b32.xlu0 %v1511, 1
    %v1533 = vpop.permute.xlu0 %1532
    %v1535 = vmul.f32 %v366, %v1533
    %1537 = vrot.lane.b32.xlu0 %v1535, 1
    %v1538 = vpop.permute.xlu0 %1537
    %v1540 = vsub.f32 %v1531, %v1538
    %s1541 = smul.f32 %s1389, 0.125
    %v1542 = vadd.f32 %v1444, %v1486
    %v1543 = vmul.f32 %v1542, 3.0
    %v1544 = vadd.f32 %v1405, %v1543
    %v1545 = vadd.f32 %v1544, %v1527
    %v1546 = vstv %s1541
    %v1547 = vmul.f32 %v1546, %v1545
    %v1548 = vadd.f32 %v1378, %v1547
    %v1549 = vadd.f32 %v1457, %v1499
    %v1550 = vmul.f32 %v1549, 3.0
    %v1551 = vadd.f32 %v1418, %v1550
    %v1552 = vadd.f32 %v1551, %v1540
    %v1553 = vmul.f32 %v1546, %v1552
    %1555 = vrot.lane.b32.xlu0 %v1553, 126
    %v1556 = vpop.permute.xlu0 %1555
    %v1558 = vadd.f32 %v1388, %v1556
    %vm1559 = vcmask 7168
    %v1560 = vsel %vm1559, %v528, %v538
    %v1561 = vsel %vm1559, %v698, %v708
    %v1562 = vsel %vm1559, %v868, %v878
    %v1563 = vsel %vm1559, %v1038, %v1048
    %v1564 = vsel %vm1559, %v1208, %v1218
    %v1565 = vsel %vm1559, %v1378, %v1388
    %v1566 = vsel %vm1559, %v1548, %v1558
    %vm1567 = vcmask 15360
    %1568 = vst.msk [vmem:[%s16] sm:$0xff] %vm1567, %v216
    %1569 = vst.msk [vmem:[%s16 + $0x8] sm:$0xff] %vm1567, %v1560
    %1570 = vst.msk [vmem:[%s16 + $0x10] sm:$0xff] %vm1567, %v1561
    %1571 = vst.msk [vmem:[%s16 + $0x18] sm:$0xff] %vm1567, %v1562
    %1572 = vst.msk [vmem:[%s16 + $0x20] sm:$0xff] %vm1567, %v1563
    %1573 = vst.msk [vmem:[%s16 + $0x28] sm:$0xff] %vm1567, %v1564
    %1574 = vst.msk [vmem:[%s16 + $0x30] sm:$0xff] %vm1567, %v1565
    %1575 = vst.msk [vmem:[%s16 + $0x38] sm:$0xff] %vm1567, %v1566
    %v1576 = vld [vmem:[%s11] ss:$2 sm:$0x3]
    %1577 = vset.pattern.permute.xlu0 0
    %1578 = vperm.xlu0 %1577, %v216
    %v1579 = vpop.permute.xlu0 %1578
    %1582 = vset.pattern.permute.xlu0 0
    %1583 = vperm.xlu0 %1582, %v528
    %v1584 = vpop.permute.xlu0 %1583
    %1587 = vset.pattern.permute.xlu0 0
    %1588 = vperm.xlu0 %1587, %v698
    %v1589 = vpop.permute.xlu0 %1588
    %1592 = vset.pattern.permute.xlu0 0
    %1593 = vperm.xlu0 %1592, %v868
    %v1594 = vpop.permute.xlu0 %1593
    %1597 = vset.pattern.permute.xlu0 0
    %1598 = vperm.xlu0 %1597, %v1038
    %v1599 = vpop.permute.xlu0 %1598
    %1602 = vset.pattern.permute.xlu0 0
    %1603 = vperm.xlu0 %1602, %v1208
    %v1604 = vpop.permute.xlu0 %1603
    %1607 = vset.pattern.permute.xlu0 0
    %1608 = vperm.xlu0 %1607, %v1378
    %v1609 = vpop.permute.xlu0 %1608
    %1612 = vset.pattern.permute.xlu0 0
    %1613 = vperm.xlu0 %1612, %v1548
    %v1614 = vpop.permute.xlu0 %1613
    %v1617 = vperm.slane %v1576, 0
    %v1618 = vperm.slane %v1576, 1
    %v1621 = vmul.f32 %v1579, %v1617
    %v1622 = vmul.f32 %v1579, %v1618
    %v1623 = vmul.f32 %v1584, %v1617
    %v1624 = vmul.f32 %v1584, %v1618
    %v1625 = vmul.f32 %v1589, %v1617
    %v1626 = vmul.f32 %v1589, %v1618
    %v1627 = vmul.f32 %v1594, %v1617
    %v1628 = vmul.f32 %v1594, %v1618
    %v1629 = vmul.f32 %v1599, %v1617
    %v1630 = vmul.f32 %v1599, %v1618
    %v1631 = vmul.f32 %v1604, %v1617
    %v1632 = vmul.f32 %v1604, %v1618
    %v1633 = vmul.f32 %v1609, %v1617
    %v1634 = vmul.f32 %v1609, %v1618
    %v1635 = vmul.f32 %v1614, %v1617
    %v1636 = vmul.f32 %v1614, %v1618
    %s1637 = scalar_lea.vmem %s11, 1
    %v1638 = vld [vmem:[%s1637] ss:$2 sm:$0x3]
    %1639 = vset.pattern.permute.xlu0 1
    %1640 = vperm.xlu0 %1639, %v216
    %v1641 = vpop.permute.xlu0 %1640
    %1643 = vset.pattern.permute.xlu0 1
    %1644 = vperm.xlu0 %1643, %v538
    %v1645 = vpop.permute.xlu0 %1644
    %1647 = vset.pattern.permute.xlu0 1
    %1648 = vperm.xlu0 %1647, %v708
    %v1649 = vpop.permute.xlu0 %1648
    %1651 = vset.pattern.permute.xlu0 1
    %1652 = vperm.xlu0 %1651, %v878
    %v1653 = vpop.permute.xlu0 %1652
    %1655 = vset.pattern.permute.xlu0 1
    %1656 = vperm.xlu0 %1655, %v1048
    %v1657 = vpop.permute.xlu0 %1656
    %1659 = vset.pattern.permute.xlu0 1
    %1660 = vperm.xlu0 %1659, %v1218
    %v1661 = vpop.permute.xlu0 %1660
    %1663 = vset.pattern.permute.xlu0 1
    %1664 = vperm.xlu0 %1663, %v1388
    %v1665 = vpop.permute.xlu0 %1664
    %1668 = vset.pattern.permute.xlu0 1
    %1669 = vperm.xlu0 %1668, %v1558
    %v1670 = vpop.permute.xlu0 %1669
    %v1673 = vperm.slane %v1638, 0
    %v1674 = vperm.slane %v1638, 1
    %v1677 = vmul.f32 %v1641, %v1673
    %v1678 = vmul.f32 %v1641, %v1674
    %v1679 = vmul.f32 %v1645, %v1673
    %v1680 = vmul.f32 %v1645, %v1674
    %v1681 = vmul.f32 %v1649, %v1673
    %v1682 = vmul.f32 %v1649, %v1674
    %v1683 = vmul.f32 %v1653, %v1673
    %v1684 = vmul.f32 %v1653, %v1674
    %v1685 = vmul.f32 %v1657, %v1673
    %v1686 = vmul.f32 %v1657, %v1674
    %v1687 = vmul.f32 %v1661, %v1673
    %v1688 = vmul.f32 %v1661, %v1674
    %v1689 = vmul.f32 %v1665, %v1673
    %v1690 = vmul.f32 %v1665, %v1674
    %v1691 = vmul.f32 %v1670, %v1673
    %v1692 = vmul.f32 %v1670, %v1674
    %v1693 = vadd.f32 %v1621, %v1677
    %v1694 = vadd.f32 %v1622, %v1678
    %v1695 = vadd.f32 %v1623, %v1679
    %v1696 = vadd.f32 %v1624, %v1680
    %v1697 = vadd.f32 %v1625, %v1681
    %v1698 = vadd.f32 %v1626, %v1682
    %v1699 = vadd.f32 %v1627, %v1683
    %v1700 = vadd.f32 %v1628, %v1684
    %v1701 = vadd.f32 %v1629, %v1685
    %v1702 = vadd.f32 %v1630, %v1686
    %v1703 = vadd.f32 %v1631, %v1687
    %v1704 = vadd.f32 %v1632, %v1688
    %v1705 = vadd.f32 %v1633, %v1689
    %v1706 = vadd.f32 %v1634, %v1690
    %v1707 = vadd.f32 %v1635, %v1691
    %v1708 = vadd.f32 %v1636, %v1692
    %v1709 = vld [vmem:[%s12] sm:$0x3]
    %v1711 = vperm.slane %v1709, 0
    %v1712 = vperm.slane %v1709, 1
    %v1715 = vadd.f32 %v1693, %v1711
    %v1716 = vadd.f32 %v1694, %v1712
    %v1717 = vadd.f32 %v1695, %v1711
    %v1718 = vadd.f32 %v1696, %v1712
    %v1719 = vadd.f32 %v1697, %v1711
    %v1720 = vadd.f32 %v1698, %v1712
    %v1721 = vadd.f32 %v1699, %v1711
    %v1722 = vadd.f32 %v1700, %v1712
    %v1723 = vadd.f32 %v1701, %v1711
    %v1724 = vadd.f32 %v1702, %v1712
    %v1725 = vadd.f32 %v1703, %v1711
    %v1726 = vadd.f32 %v1704, %v1712
    %v1727 = vadd.f32 %v1705, %v1711
    %v1728 = vadd.f32 %v1706, %v1712
    %v1729 = vadd.f32 %v1707, %v1711
    %v1730 = vadd.f32 %v1708, %v1712
    %v1731 = vmax.f32 %v1715, 0.0
    %v1732 = vmax.f32 %v1716, 0.0
    %v1733 = vmax.f32 %v1717, 0.0
    %v1734 = vmax.f32 %v1718, 0.0
    %v1735 = vmax.f32 %v1719, 0.0
    %v1736 = vmax.f32 %v1720, 0.0
    %v1737 = vmax.f32 %v1721, 0.0
    %v1738 = vmax.f32 %v1722, 0.0
    %v1739 = vmax.f32 %v1723, 0.0
    %v1740 = vmax.f32 %v1724, 0.0
    %v1741 = vmax.f32 %v1725, 0.0
    %v1742 = vmax.f32 %v1726, 0.0
    %v1743 = vmax.f32 %v1727, 0.0
    %v1744 = vmax.f32 %v1728, 0.0
    %v1745 = vmax.f32 %v1729, 0.0
    %v1746 = vmax.f32 %v1730, 0.0
    %v1747 = vld [vmem:[%s13] sm:$0xff]
    %v1748 = vld [vmem:[%s13 + $0x8] sm:$0xff]
    %v1749 = vld [vmem:[%s13 + $0x10] sm:$0xff]
    %v1750 = vld [vmem:[%s13 + $0x18] sm:$0xff]
    %v1751 = vld [vmem:[%s13 + $0x20] sm:$0xff]
    %v1752 = vld [vmem:[%s13 + $0x28] sm:$0xff]
    %v1753 = vld [vmem:[%s13 + $0x30] sm:$0xff]
    %v1754 = vld [vmem:[%s13 + $0x38] sm:$0xff]
    %v1755 = vld [vmem:[%s13 + $0x40] sm:$0xff]
    %v1756 = vld [vmem:[%s13 + $0x48] sm:$0xff]
    %v1757 = vld [vmem:[%s13 + $0x50] sm:$0xff]
    %v1758 = vld [vmem:[%s13 + $0x58] sm:$0xff]
    %v1759 = vld [vmem:[%s13 + $0x60] sm:$0xff]
    %v1760 = vld [vmem:[%s13 + $0x68] sm:$0xff]
    %v1761 = vld [vmem:[%s13 + $0x70] sm:$0xff]
    %v1762 = vld [vmem:[%s13 + $0x78] sm:$0xff]
    %v1763 = vld [vmem:[%s13 + $0x80] sm:$0xff]
    %v1764 = vld [vmem:[%s13 + $0x88] sm:$0xff]
    %v1765 = vld [vmem:[%s13 + $0x90] sm:$0xff]
    %v1766 = vld [vmem:[%s13 + $0x98] sm:$0xff]
    %v1767 = vld [vmem:[%s13 + $0xa0] sm:$0xff]
    %v1768 = vld [vmem:[%s13 + $0xa8] sm:$0xff]
    %v1769 = vld [vmem:[%s13 + $0xb0] sm:$0xff]
    %v1770 = vld [vmem:[%s13 + $0xb8] sm:$0xff]
    %v1771 = vld [vmem:[%s13 + $0xc0] sm:$0xff]
    %v1772 = vld [vmem:[%s13 + $0xc8] sm:$0xff]
    %v1773 = vld [vmem:[%s13 + $0xd0] sm:$0xff]
    %v1774 = vld [vmem:[%s13 + $0xd8] sm:$0xff]
    %v1775 = vld [vmem:[%s13 + $0xe0] sm:$0xff]
    %v1776 = vld [vmem:[%s13 + $0xe8] sm:$0xff]
    %v1777 = vld [vmem:[%s13 + $0xf0] sm:$0xff]
    %v1778 = vld [vmem:[%s13 + $0xf8] sm:$0xff]
    %v1779 = vld [vmem:[%s14] sm:$0x1]
    %v1781 = vperm.slane %v1779, 0
    %1783 = vmatpush.msra.mxu0 %v1762
    %1784 = vmatpush.msra.mxu0 %v1761
    %1785 = vmatpush.msra.mxu0 %v1760
    %1786 = vmatpush.msra.mxu0 %v1759
    %1787 = vmatpush.msra.mxu0 %v1758
    %1788 = vmatpush.msra.mxu0 %v1757
    %1789 = vmatpush.msra.mxu0 %v1756
    %1790 = vmatpush.msra.mxu0 %v1755
    %1791 = vmatpush.msra.mxu0 %v1754
    %1792 = vmatpush.msra.mxu0 %v1753
    %1793 = vmatpush.msra.mxu0 %v1752
    %1794 = vmatpush.msra.mxu0 %v1751
    %1795 = vmatpush.msra.mxu0 %v1750
    %1796 = vmatpush.msra.mxu0 %v1749
    %1797 = vmatpush.msra.mxu0 %v1748
    %1798 = vmatpush.msra.mxu0 %v1747
    %1799 = vmatmul.f32.gmra.mxu0 %v1731
    %v1800 = vpop.f32.mrf.mxu0
    %v1801 = vadd.f32 %v1781, %v1800
    %1802 = vmatmul.f32.gmra.mxu0 %v1733
    %v1803 = vpop.f32.mrf.mxu0
    %v1804 = vadd.f32 %v1781, %v1803
    %1805 = vmatmul.f32.gmra.mxu0 %v1735
    %v1806 = vpop.f32.mrf.mxu0
    %v1807 = vadd.f32 %v1781, %v1806
    %1808 = vmatmul.f32.gmra.mxu0 %v1737
    %v1809 = vpop.f32.mrf.mxu0
    %v1810 = vadd.f32 %v1781, %v1809
    %1811 = vmatmul.f32.gmra.mxu0 %v1739
    %v1812 = vpop.f32.mrf.mxu0
    %v1813 = vadd.f32 %v1781, %v1812
    %1814 = vmatmul.f32.gmra.mxu0 %v1741
    %v1815 = vpop.f32.mrf.mxu0
    %v1816 = vadd.f32 %v1781, %v1815
    %1817 = vmatmul.f32.gmra.mxu0 %v1743
    %v1818 = vpop.f32.mrf.mxu0
    %v1819 = vadd.f32 %v1781, %v1818
    %1820 = vmatmul.f32.gmra.mxu0 %v1745
    %v1821 = vpop.f32.mrf.mxu0
    %v1822 = vadd.f32 %v1781, %v1821
    %1823 = vdwg.mxu0
    %1824 = vmatpush.msra.mxu0 %v1778
    %1825 = vmatpush.msra.mxu0 %v1777
    %1826 = vmatpush.msra.mxu0 %v1776
    %1827 = vmatpush.msra.mxu0 %v1775
    %1828 = vmatpush.msra.mxu0 %v1774
    %1829 = vmatpush.msra.mxu0 %v1773
    %1830 = vmatpush.msra.mxu0 %v1772
    %1831 = vmatpush.msra.mxu0 %v1771
    %1832 = vmatpush.msra.mxu0 %v1770
    %1833 = vmatpush.msra.mxu0 %v1769
    %1834 = vmatpush.msra.mxu0 %v1768
    %1835 = vmatpush.msra.mxu0 %v1767
    %1836 = vmatpush.msra.mxu0 %v1766
    %1837 = vmatpush.msra.mxu0 %v1765
    %1838 = vmatpush.msra.mxu0 %v1764
    %1839 = vmatpush.msra.mxu0 %v1763
    %1840 = vmatmul.f32.gmra.mxu0 %v1732
    %v1841 = vpop.f32.mrf.mxu0
    %v1842 = vadd.f32 %v1801, %v1841
    %1843 = vmatmul.f32.gmra.mxu0 %v1734
    %v1844 = vpop.f32.mrf.mxu0
    %v1845 = vadd.f32 %v1804, %v1844
    %1846 = vmatmul.f32.gmra.mxu0 %v1736
    %v1847 = vpop.f32.mrf.mxu0
    %v1848 = vadd.f32 %v1807, %v1847
    %1849 = vmatmul.f32.gmra.mxu0 %v1738
    %v1850 = vpop.f32.mrf.mxu0
    %v1851 = vadd.f32 %v1810, %v1850
    %1852 = vmatmul.f32.gmra.mxu0 %v1740
    %v1853 = vpop.f32.mrf.mxu0
    %v1854 = vadd.f32 %v1813, %v1853
    %1855 = vmatmul.f32.gmra.mxu0 %v1742
    %v1856 = vpop.f32.mrf.mxu0
    %v1857 = vadd.f32 %v1816, %v1856
    %1858 = vmatmul.f32.gmra.mxu0 %v1744
    %v1859 = vpop.f32.mrf.mxu0
    %v1860 = vadd.f32 %v1819, %v1859
    %1861 = vmatmul.f32.gmra.mxu0 %v1746
    %v1862 = vpop.f32.mrf.mxu0
    %v1863 = vadd.f32 %v1822, %v1862
    %1864 = vdwg.mxu0
    %vm1865 = vcmask 130048
    %1866 = vst.msk [vmem:[%s15] sm:$0xff] %vm1865, %v1842
    %1867 = vst.msk [vmem:[%s15 + $0x8] sm:$0xff] %vm1865, %v1845
    %1868 = vst.msk [vmem:[%s15 + $0x10] sm:$0xff] %vm1865, %v1848
    %1869 = vst.msk [vmem:[%s15 + $0x18] sm:$0xff] %vm1865, %v1851
    %1870 = vst.msk [vmem:[%s15 + $0x20] sm:$0xff] %vm1865, %v1854
    %1871 = vst.msk [vmem:[%s15 + $0x28] sm:$0xff] %vm1865, %v1857
    %1872 = vst.msk [vmem:[%s15 + $0x30] sm:$0xff] %vm1865, %v1860
    %1873 = vst.msk [vmem:[%s15 + $0x38] sm:$0xff] %vm1865, %v1863
    // Predicated region
    $region66: #{tpu_custom_call.1} parent=1 // pred_check
      _
    $region67: #{tpu_custom_call.1} parent=1 // pred_check_branch
      %1875 = sbr.rel (0) target = $region69
    $region68: #{tpu_custom_call.1} parent=1 // pred_region
      _
    $region69: #{tpu_custom_call.1} parent=1 // pred_fallthru
      _
    // Predicated region
    $region70: #{tpu_custom_call.1} parent=1 // pred_check
      _
    $region71: #{tpu_custom_call.1} parent=1 // pred_check_branch
      %1877 = sbr.rel (0) target = $region73
    $region72: #{tpu_custom_call.1} parent=1 // pred_region
      _
    $region73: #{tpu_custom_call.1} parent=1 // pred_fallthru
      _
    // Predicated region
    $region74: #{tpu_custom_call.1} parent=1 // pred_check
      _
    $region75: #{tpu_custom_call.1} parent=1 // pred_check_branch
      %1879 = sbr.rel (0) target = $region77
    $region76: #{tpu_custom_call.1} parent=1 // pred_region
      _
    $region77: #{tpu_custom_call.1} parent=1 // pred_fallthru
      _
    // Predicated region
    $region78: #{tpu_custom_call.1} parent=1 // pred_check
      _
    $region79: #{tpu_custom_call.1} parent=1 // pred_check_branch
      %1881 = sbr.rel (0) target = $region81
    $region80: #{tpu_custom_call.1} parent=1 // pred_region
      _
    $region81: #{tpu_custom_call.1} parent=1 // pred_fallthru
      _
    // Predicated region
    $region82: #{tpu_custom_call.1} parent=1 // pred_check
      _
    $region83: #{tpu_custom_call.1} parent=1 // pred_check_branch
      %1883 = sbr.rel (0) target = $region85
    $region84: #{tpu_custom_call.1} parent=1 // pred_region
      _
    $region85: #{tpu_custom_call.1} parent=1 // pred_fallthru
      _
    // Predicated region
    $region86: #{tpu_custom_call.1} parent=1 // pred_check
      _
    $region87: #{tpu_custom_call.1} parent=1 // pred_check_branch
      %1885 = sbr.rel (0) target = $region89
    $region88: #{tpu_custom_call.1} parent=1 // pred_region
      _
    $region89: #{tpu_custom_call.1} parent=1 // pred_fallthru
      _
    %1886 = vsyncpa [#allocation3], 1

</llo_original>
